<compile_context>
chip_gen: v7x
topology: tpu7x:2x2x1
jax: 0.10.0
libtpu: 0.0.40
codegen_flags: <defaults>
</compile_context>

<pallas_src>
import functools

import jax
import jax.numpy as jnp
from jax.experimental import pallas as pl
from jax.experimental.pallas import tpu as pltpu

BN_EPS = 1e-5
_TARGET_TM = 2048          # target rows per block in the lane-packed layout

try:  # 75% of physical VMEM: 96 MiB on v5e/v6e (128 MiB), 48 MiB on v7x (64 MiB / TC)
    _VMEM_LIMIT = min(int(pltpu.get_tpu_info().vmem_capacity_bytes * 3 // 4),
                      96 * 1024 * 1024)
except Exception:  # pragma: no cover - conservative fallback
    _VMEM_LIMIT = 48 * 1024 * 1024


# ----------------------------------------------------------------------------
# small helpers
# ----------------------------------------------------------------------------
def _round_up(v, m):
    return (v + m - 1) // m * m


def _cdiv(a, b):
    return -(-a // b)


def _choose_tiles(rows):
    """Row-tile size (multiple of 16 for bf16 sublanes) minimizing padding waste."""
    grid = max(1, _cdiv(rows, _TARGET_TM))
    tm = _round_up(_cdiv(rows, grid), 16)
    return tm, grid, tm * grid


def _compiler_params():
    return pltpu.CompilerParams(
        dimension_semantics=("parallel",),
        vmem_limit_bytes=_VMEM_LIMIT,
    )


def _apply_act(y, act):
    if act is None:
        return y
    if act == "relu":
        return jnp.maximum(y, 0.0)
    if act == "relu6":
        return jnp.clip(y, 0.0, 6.0)
    if act == "hard_swish":
        return y * (jnp.clip(y + 3.0, 0.0, 6.0) * (1.0 / 6.0))
    raise NotImplementedError("The activation function is selected incorrectly.")


# ----------------------------------------------------------------------------
# Pallas kernels
# ----------------------------------------------------------------------------
def matmul_stats_kernel(a_ref, w_ref, y_ref, st_ref):
    """Pass 1 (groups=1): bf16 MXU matmul on the lane-packed layout + partial BN stats.

    a_ref: (tm, r*kc) bf16, w_ref: (r*kc, r*C) bf16 block-diagonal, y_ref: (tm, r*C)
    bf16 (lane-dense), st_ref: (1, 2, r*C) f32 partial sums / sums-of-squares.
    """
    y = jnp.dot(a_ref[...], w_ref[...], preferred_element_type=jnp.float32)
    y_ref[...] = y.astype(y_ref.dtype)
    st_ref[0:1, 0:1, :] = jnp.sum(y, axis=0, keepdims=True)[None]
    st_ref[0:1, 1:2, :] = jnp.sum(y * y, axis=0, keepdims=True)[None]


def dw_conv_stats_kernel(x_ref, w_ref, y_ref, st_ref, *, k, stride, ho, wo, c):
    """Pass 1 (depthwise): unrolled k*k VPU MACs in the lane-packed (H, W*C) layout.

    x_ref: (1, s*s, Lh, Lw*C) bf16 phase-decomposed padded input, w_ref: (k*k, Wo*C)
    f32 (weights pre-tiled over Wo), y_ref: (1, Ho, Wo*C) bf16, st_ref: (1, 2, Wo*C).
    """
    woc = wo * c
    phases = [x_ref[0, p].astype(jnp.float32) for p in range(stride * stride)]
    acc = jnp.zeros((ho, woc), jnp.float32)
    for kh in range(k):
        for kw in range(k):
            ph = phases[(kh % stride) * stride + (kw % stride)]
            rh, rw = kh // stride, kw // stride
            # TODO(synk): the rw*c lane offset could use pltpu.roll (idle XLU slot)
            # instead of a shifted slice to keep load/VALU slots free for the MACs.
            tap = ph[rh:rh + ho, rw * c:rw * c + woc]
            acc = acc + tap * w_ref[kh * k + kw:kh * k + kw + 1, :]
    y_ref[0] = acc.astype(y_ref.dtype)
    st_ref[0:1, 0:1, :] = jnp.sum(acc, axis=0, keepdims=True)[None]
    st_ref[0:1, 1:2, :] = jnp.sum(acc * acc, axis=0, keepdims=True)[None]


def bn_act_apply_kernel(y_ref, sc_ref, sh_ref, o_ref, *, act):
    """Pass 2: y * scale + shift (+ activation). bf16 storage, f32 math (v5e-safe)."""
    y = y_ref[...].astype(jnp.float32)
    o_ref[...] = _apply_act(y * sc_ref[...] + sh_ref[...], act)


# ----------------------------------------------------------------------------
# wrapper-side glue (im2col / phase decomposition / packing) + pallas_call drivers
# ----------------------------------------------------------------------------
def _im2col(x_nhwc_bf16, k, stride, pad):
    n, h, w, c = x_nhwc_bf16.shape
    ho = (h + 2 * pad - k) // stride + 1
    wo = (w + 2 * pad - k) // stride + 1
    if k == 1 and stride == 1 and pad == 0:
        return x_nhwc_bf16.reshape(n * h * w, c), ho, wo
    xp = jnp.pad(x_nhwc_bf16, ((0, 0), (pad, pad), (pad, pad), (0, 0)))
    cols = []
    for kh in range(k):
        for kw in range(k):
            cols.append(xp[:, kh: kh + (ho - 1) * stride + 1: stride,
                           kw: kw + (wo - 1) * stride + 1: stride, :])
    patches = jnp.concatenate(cols, axis=-1)  # (N, Ho, Wo, k*k*C), tap-major (kh,kw,cin)
    # TODO(synk): k>1 dense convs still materialize a k*k*Cin bf16 im2col tensor in HBM;
    # in-kernel halo/phase extraction (as in the depthwise path) would reduce it to ~1x.
    return patches.reshape(n * ho * wo, k * k * c), ho, wo


def _pack_rows(x2d, r, tm, grid):
    """(M, C) -> (tm*grid, r*C): zero-pad rows and fold r consecutive rows into lanes."""
    m, c = x2d.shape
    m_tot = r * tm * grid
    if m_tot != m:
        x2d = jnp.pad(x2d, ((0, m_tot - m), (0, 0)))
    return x2d.reshape(tm * grid, r * c)


def _conv_matmul_pass1(patches_bf16, w_packed, r, cout):
    """Dense conv: lane-packed bf16 matmul, bf16 y + f32 partial stats."""
    m, kc = patches_bf16.shape
    rows = _cdiv(m, r)
    tm, grid_m, rows_pad = _choose_tiles(rows)
    a = _pack_rows(patches_bf16, r, tm, grid_m)            # (rows_pad, r*kc) bf16
    rkc, rc = r * kc, r * cout
    y, st = pl.pallas_call(
        matmul_stats_kernel,
        out_shape=(jax.ShapeDtypeStruct((rows_pad, rc), jnp.bfloat16),
                   jax.ShapeDtypeStruct((grid_m, 2, rc), jnp.float32)),
        grid=(grid_m,),
        in_specs=[pl.BlockSpec((tm, rkc), lambda i: (i, 0)),
                  pl.BlockSpec((rkc, rc), lambda i: (0, 0))],
        out_specs=[pl.BlockSpec((tm, rc), lambda i: (i, 0)),
                   pl.BlockSpec((1, 2, rc), lambda i: (i, 0, 0))],
        compiler_params=_compiler_params(),
        cost_estimate=pl.CostEstimate(
            flops=2 * rows_pad * rkc * rc,
            transcendentals=0,
            bytes_accessed=2 * rows_pad * rkc + 2 * rkc * rc + 2 * rows_pad * rc
                           + 4 * grid_m * 2 * rc),
    )(a, w_packed)
    stats = jnp.sum(st, axis=0).reshape(2, r, cout).sum(axis=1)   # (2, C)
    return y, stats


def _dw_phases(x_nhwc, k, stride, pad, ho, wo):
    """(N, s*s, Lh, Lw*C) bf16 phase-decomposed padded input (~1x HBM footprint)."""
    n, h, w, c = x_nhwc.shape
    need_h = ho + (k - 1) // stride
    need_w = wo + (k - 1) // stride
    hp = max(h + 2 * pad, stride * need_h)
    wp = max(w + 2 * pad, stride * need_w)
    xp = jnp.pad(x_nhwc.astype(jnp.bfloat16),
                 ((0, 0), (pad, hp - h - pad), (pad, wp - w - pad), (0, 0)))
    phases = []
    for ph in range(stride):
        for pw in range(stride):
            phases.append(xp[:, ph::stride, pw::stride, :][:, :need_h, :need_w, :])
    st = jnp.stack(phases, axis=1)                    # (N, s*s, need_h, need_w, C)
    return st.reshape(n, stride * stride, need_h, need_w * c)


def _dw_conv_pass1(x_nhwc, w_kk_c, k, stride, pad):
    n, h, w, c = x_nhwc.shape
    ho = (h + 2 * pad - k) // stride + 1
    wo = (w + 2 * pad - k) // stride + 1
    woc = wo * c
    phases = _dw_phases(x_nhwc, k, stride, pad, ho, wo)
    _, nph, lh, lwc = phases.shape
    w_tiled = jnp.tile(w_kk_c, (1, wo))               # (k*k, Wo*C) f32
    y, st = pl.pallas_call(
        functools.partial(dw_conv_stats_kernel, k=k, stride=stride, ho=ho, wo=wo, c=c),
        out_shape=(jax.ShapeDtypeStruct((n, ho, woc), jnp.bfloat16),
                   jax.ShapeDtypeStruct((n, 2, woc), jnp.float32)),
        grid=(n,),
        in_specs=[pl.BlockSpec((1, nph, lh, lwc), lambda i: (i, 0, 0, 0)),
                  pl.BlockSpec((k * k, woc), lambda i: (0, 0))],
        out_specs=[pl.BlockSpec((1, ho, woc), lambda i: (i, 0, 0)),
                   pl.BlockSpec((1, 2, woc), lambda i: (i, 0, 0))],
        compiler_params=_compiler_params(),
    )(phases, w_tiled)
    # TODO(synk): v7x — add an Ho-row-tile grid axis (with (k-1)//stride halo via manual
    # DMA) so large images fit the 64 MiB VMEM and both TensorCores get >N grid points.
    stats = jnp.sum(st, axis=0).reshape(2, wo, c).sum(axis=1)     # (2, C)
    return y, stats, ho, wo


def _bn_scale_shift(stats, gamma, beta, m_true):
    """Fold train-mode BN (batch statistics) into a per-channel scale/shift (f32)."""
    inv_m = 1.0 / float(m_true)
    mean = stats[0] * inv_m
    var = jnp.maximum(stats[1] * inv_m - mean * mean, 0.0)
    # TODO(synk): single-pass E[y^2]-mean^2 can lose precision when |mean| >> std.
    scale = gamma * jax.lax.rsqrt(var + BN_EPS)
    shift = beta - mean * scale
    return scale, shift


def _bn_act_pass2(y_rows, scale_row, shift_row, act, out_rows):
    """y_rows: (rows, LW) bf16, scale/shift: (1, LW) f32 -> (out_rows, LW) f32."""
    rows, lw = y_rows.shape
    tm, grid_m, rows_pad = _choose_tiles(rows)
    if rows_pad != rows:
        y_rows = jnp.pad(y_rows, ((0, rows_pad - rows), (0, 0)))
    out = pl.pallas_call(
        functools.partial(bn_act_apply_kernel, act=act),
        out_shape=jax.ShapeDtypeStruct((rows_pad, lw), jnp.float32),
        grid=(grid_m,),
        in_specs=[pl.BlockSpec((tm, lw), lambda i: (i, 0)),
                  pl.BlockSpec((1, lw), lambda i: (0, 0)),
                  pl.BlockSpec((1, lw), lambda i: (0, 0))],
        out_specs=pl.BlockSpec((tm, lw), lambda i: (i, 0)),
        compiler_params=_compiler_params(),
    )(y_rows, scale_row, shift_row)
    return out[:out_rows]


# ----------------------------------------------------------------------------
# the module
# ----------------------------------------------------------------------------
class ConvBNLayer:
    """Pallas-TPU ConvBNLayer: Conv2d(bias=False) + BatchNorm2d + optional activation.

    groups=1 (dense conv via im2col + lane-packed MXU matmul) and depthwise
    (groups == in_c == out_c) are supported.  BatchNorm runs in training mode
    (per-batch statistics), matching a freshly constructed torch module in train().
    """

    def __init__(self, in_c, out_c, filter_size, stride, padding,
                 num_groups=1, act=None, *, key):
        self.in_c, self.out_c = in_c, out_c
        self.k, self.stride, self.pad = filter_size, stride, padding
        self.groups, self.act = num_groups, act
        # r output pixels are folded into the lane axis so every store is ~128-lane dense
        self.r = max(1, 128 // out_c) if out_c < 128 else 1
        if num_groups == 1:
            fan_out = out_c * filter_size * filter_size
            w = jax.random.normal(
                key, (filter_size * filter_size * in_c, out_c), jnp.float32
            ) * (2.0 / float(fan_out)) ** 0.5
            self.w = w
            # block-diagonal weight (kron(I_r, W)): the MXU then emits the lane-packed
            # (r pixels x out_c) output tile directly.
            self.w_packed = jnp.kron(
                jnp.eye(self.r, dtype=jnp.float32), w).astype(jnp.bfloat16)
        elif num_groups == in_c and in_c == out_c:
            fan_out = filter_size * filter_size
            self.w = jax.random.normal(
                key, (filter_size * filter_size, out_c), jnp.float32
            ) * (2.0 / float(fan_out)) ** 0.5
        else:
            # TODO(synk): general grouped conv (1 < groups < in_c) is not implemented.
            raise NotImplementedError("only groups=1 or depthwise (groups=in_c=out_c)")
        self.gamma = jnp.ones((out_c,), jnp.float32)
        self.beta = jnp.zeros((out_c,), jnp.float32)
        # TODO(synk): BatchNorm running mean/var buffers are not updated (train-mode
        # forward does not read them).

    def forward_nhwc(self, x_nhwc):
        """NHWC in / NHWC out — use this in a layer chain to avoid per-layer transposes."""
        n = x_nhwc.shape[0]
        x = x_nhwc.astype(jnp.float32)
        if self.groups == 1:
            patches, ho, wo = _im2col(
                x.astype(jnp.bfloat16), self.k, self.stride, self.pad)
            m_true = n * ho * wo
            y, stats = _conv_matmul_pass1(patches, self.w_packed, self.r, self.out_c)
            scale, shift = _bn_scale_shift(stats, self.gamma, self.beta, m_true)
            sc = jnp.tile(scale, self.r)[None]         # (1, r*C)
            sh = jnp.tile(shift, self.r)[None]
            out = _bn_act_pass2(y, sc, sh, self.act, out_rows=y.shape[0])
            # free row-major unpack: (rows, r*C) -> (rows*r, C) -> (N, Ho, Wo, C)
            out = out.reshape(-1, self.out_c)[:m_true].reshape(n, ho, wo, self.out_c)
        else:
            y3, stats, ho, wo = _dw_conv_pass1(x, self.w, self.k, self.stride, self.pad)
            m_true = n * ho * wo
            scale, shift = _bn_scale_shift(stats, self.gamma, self.beta, m_true)
            sc = jnp.tile(scale, wo)[None]             # (1, Wo*C)
            sh = jnp.tile(shift, wo)[None]
            y_rows = y3.reshape(n * ho, wo * self.out_c)
            out = _bn_act_pass2(y_rows, sc, sh, self.act, out_rows=n * ho)
            out = out.reshape(n, ho, wo, self.out_c)
        return out

    def __call__(self, x_nchw):
        # standalone PyTorch-layout entry point (NCHW in / NCHW out)
        out = self.forward_nhwc(jnp.transpose(x_nchw, (0, 2, 3, 1)))
        return jnp.transpose(out, (0, 3, 1, 2))


# ----------------------------------------------------------------------------
if __name__ == "__main__":
    root = jax.random.PRNGKey(0)
    kx, k1, k2, k3, k4 = jax.random.split(root, 5)
    x = jax.random.normal(kx, (2, 4, 16, 16), jnp.float32)  # NCHW

    stem = ConvBNLayer(4, 16, filter_size=3, stride=2, padding=1,
                       num_groups=1, act="hard_swish", key=k1)
    dw3 = ConvBNLayer(16, 16, filter_size=3, stride=1, padding=1,
                      num_groups=16, act="relu", key=k2)
    dw5 = ConvBNLayer(16, 16, filter_size=5, stride=2, padding=2,
                      num_groups=16, act="relu6", key=k3)
    pw = ConvBNLayer(16, 32, filter_size=1, stride=1, padding=0,
                     num_groups=1, act=None, key=k4)

    @jax.jit
    def forward(inp_nchw):
        # single NCHW<->NHWC transpose pair at the network boundary; layers chain in NHWC
        h = jnp.transpose(inp_nchw, (0, 2, 3, 1))
        y1 = stem.forward_nhwc(h)    # (2, 8, 8, 16)
        y2 = dw3.forward_nhwc(y1)    # (2, 8, 8, 16)
        y3 = dw5.forward_nhwc(y2)    # (2, 4, 4, 16)
        y4 = pw.forward_nhwc(y3)     # (2, 4, 4, 32)
        to_nchw = lambda t: jnp.transpose(t, (0, 3, 1, 2))
        return to_nchw(y1), to_nchw(y2), to_nchw(y3), to_nchw(y4)

    outs = jax.block_until_ready(forward(x))
    expected = [(2, 16, 8, 8), (2, 16, 8, 8), (2, 16, 4, 4), (2, 32, 4, 4)]
    for o, e in zip(outs, expected):
        assert o.shape == e, (o.shape, e)
        assert bool(jnp.all(jnp.isfinite(o)))
    print("KERNEL_OK")
</pallas_src>

<mosaic_0001>
module attributes {stable_mosaic.version = 11 : i64} {
  func.func @matmul_stats_kernel(%arg0: i32, %arg1: memref<16x288xbf16, #tpu.memory_space<vmem>>, %arg2: memref<288x128xbf16, #tpu.memory_space<vmem>>, %arg3: memref<16x128xbf16, #tpu.memory_space<vmem>>, %arg4: memref<1x2x128xf32, #tpu.memory_space<vmem>>) attributes {dimension_semantics = [#tpu.dimension_semantics<parallel>], iteration_bounds = array<i64: 1>, scalar_prefetch = 0 : i64, scratch_operands = 0 : i64, tpu.core_type = #tpu.core_type<tc>, window_params = [{transform_indices = @transform_0, window_bounds = array<i64: 16, 288>}, {pipeline_mode = #tpu.pipeline_mode<synchronous>, transform_indices = @transform_1, window_bounds = array<i64: 288, 128>}, {transform_indices = @transform_2, window_bounds = array<i64: 16, 128>}, {transform_indices = @transform_3, window_bounds = array<i64: 1, 2, 128>}]} {
    %c0 = arith.constant 0 : index
    %c0_0 = arith.constant 0 : index
    %0 = vector.load %arg1[%c0, %c0_0] : memref<16x288xbf16, #tpu.memory_space<vmem>>, vector<16x288xbf16>
    %c0_1 = arith.constant 0 : index
    %c0_2 = arith.constant 0 : index
    %1 = vector.load %arg2[%c0_1, %c0_2] : memref<288x128xbf16, #tpu.memory_space<vmem>>, vector<288x128xbf16>
    %cst = arith.constant dense<0.000000e+00> : vector<16x128xf32>
    %2 = tpu.matmul %0, %1, %cst {dimension_numbers = #tpu.dot_dimension_numbers<[1], [0], [0], [1], [0, 0, 1, 1], [], []>} : vector<16x288xbf16>, vector<288x128xbf16>, vector<16x128xf32> -> vector<16x128xf32>
    %3 = arith.truncf %2 : vector<16x128xf32> to vector<16x128xbf16>
    %c0_3 = arith.constant 0 : index
    %c0_4 = arith.constant 0 : index
    %4 = vector.load %arg3[%c0_3, %c0_4] : memref<16x128xbf16, #tpu.memory_space<vmem>>, vector<16x128xbf16>
    tpu.vector_store %arg3[%c0_3, %c0_4], %3 {strides = array<i32>} : memref<16x128xbf16, #tpu.memory_space<vmem>>, vector<16x128xbf16>,
    %cst_5 = arith.constant dense<0.000000e+00> : vector<128xf32>
    %5 = vector.multi_reduction <add>, %2, %cst_5 [0] : vector<16x128xf32> to vector<128xf32>
    %6 = vector.shape_cast %5 : vector<128xf32> to vector<1x128xf32>
    %7 = vector.shape_cast %6 : vector<1x128xf32> to vector<1x1x128xf32>
    %c0_6 = arith.constant 0 : index
    %c0_7 = arith.constant 0 : index
    %c0_8 = arith.constant 0 : index
    %8 = vector.load %arg4[%c0_6, %c0_7, %c0_8] : memref<1x2x128xf32, #tpu.memory_space<vmem>>, vector<1x1x128xf32>
    tpu.vector_store %arg4[%c0_6, %c0_7, %c0_8], %7 {strides = array<i32>} : memref<1x2x128xf32, #tpu.memory_space<vmem>>, vector<1x1x128xf32>,
    %9 = arith.mulf %2, %2 : vector<16x128xf32>
    %cst_9 = arith.constant dense<0.000000e+00> : vector<128xf32>
    %10 = vector.multi_reduction <add>, %9, %cst_9 [0] : vector<16x128xf32> to vector<128xf32>
    %11 = vector.shape_cast %10 : vector<128xf32> to vector<1x128xf32>
    %12 = vector.shape_cast %11 : vector<1x128xf32> to vector<1x1x128xf32>
    %c0_10 = arith.constant 0 : index
    %c1 = arith.constant 1 : index
    %c0_11 = arith.constant 0 : index
    %13 = vector.load %arg4[%c0_10, %c1, %c0_11] : memref<1x2x128xf32, #tpu.memory_space<vmem>>, vector<1x1x128xf32>
    tpu.vector_store %arg4[%c0_10, %c1, %c0_11], %12 {strides = array<i32>} : memref<1x2x128xf32, #tpu.memory_space<vmem>>, vector<1x1x128xf32>,
    return
  }
  func.func @transform_0(%arg0: i32) -> (i32, i32) {
    %c0_i32 = arith.constant 0 : i32
    %c0_i32_0 = arith.constant 0 : i32
    return %arg0, %c0_i32 : i32, i32
  }
  func.func @transform_1(%arg0: i32) -> (i32, i32) {
    %c0_i32 = arith.constant 0 : i32
    %c0_i32_0 = arith.constant 0 : i32
    %c0_i32_1 = arith.constant 0 : i32
    return %c0_i32, %c0_i32_0 : i32, i32
  }
  func.func @transform_2(%arg0: i32) -> (i32, i32) {
    %c0_i32 = arith.constant 0 : i32
    %c0_i32_0 = arith.constant 0 : i32
    return %arg0, %c0_i32 : i32, i32
  }
  func.func @transform_3(%arg0: i32) -> (i32, i32, i32) {
    %c0_i32 = arith.constant 0 : i32
    %c0_i32_0 = arith.constant 0 : i32
    %c0_i32_1 = arith.constant 0 : i32
    return %arg0, %c0_i32, %c0_i32_0 : i32, i32, i32
  }
}

module attributes {stable_mosaic.version = 11 : i64} {
  func.func @bn_act_apply_kernel(%arg0: i32, %arg1: memref<16x128xbf16, #tpu.memory_space<vmem>>, %arg2: memref<1x128xf32, #tpu.memory_space<vmem>>, %arg3: memref<1x128xf32, #tpu.memory_space<vmem>>, %arg4: memref<16x128xf32, #tpu.memory_space<vmem>>) attributes {dimension_semantics = [#tpu.dimension_semantics<parallel>], iteration_bounds = array<i64: 1>, scalar_prefetch = 0 : i64, scratch_operands = 0 : i64, tpu.core_type = #tpu.core_type<tc>, window_params = [{transform_indices = @transform_0, window_bounds = array<i64: 16, 128>}, {pipeline_mode = #tpu.pipeline_mode<synchronous>, transform_indices = @transform_1, window_bounds = array<i64: 1, 128>}, {pipeline_mode = #tpu.pipeline_mode<synchronous>, transform_indices = @transform_2, window_bounds = array<i64: 1, 128>}, {transform_indices = @transform_3, window_bounds = array<i64: 16, 128>}]} {
    %c0 = arith.constant 0 : index
    %c0_0 = arith.constant 0 : index
    %0 = vector.load %arg1[%c0, %c0_0] : memref<16x128xbf16, #tpu.memory_space<vmem>>, vector<16x128xbf16>
    %1 = arith.extf %0 : vector<16x128xbf16> to vector<16x128xf32>
    %c0_1 = arith.constant 0 : index
    %c0_2 = arith.constant 0 : index
    %2 = vector.load %arg2[%c0_1, %c0_2] : memref<1x128xf32, #tpu.memory_space<vmem>>, vector<1x128xf32>
    %3 = vector.broadcast %2 : vector<1x128xf32> to vector<16x128xf32>
    %4 = arith.mulf %1, %3 : vector<16x128xf32>
    %c0_3 = arith.constant 0 : index
    %c0_4 = arith.constant 0 : index
    %5 = vector.load %arg3[%c0_3, %c0_4] : memref<1x128xf32, #tpu.memory_space<vmem>>, vector<1x128xf32>
    %6 = vector.broadcast %5 : vector<1x128xf32> to vector<16x128xf32>
    %7 = arith.addf %4, %6 : vector<16x128xf32>
    %cst = arith.constant 3.000000e+00 : f32
    %8 = vector.broadcast %cst : f32 to vector<16x128xf32>
    %9 = arith.addf %7, %8 : vector<16x128xf32>
    %cst_5 = arith.constant 0.000000e+00 : f32
    %cst_6 = arith.constant 6.000000e+00 : f32
    %10 = vector.broadcast %cst_5 : f32 to vector<16x128xf32>
    %11 = arith.maximumf %10, %9 : vector<16x128xf32>
    %12 = vector.broadcast %cst_6 : f32 to vector<16x128xf32>
    %13 = arith.minimumf %12, %11 : vector<16x128xf32>
    %cst_7 = arith.constant 0.166666672 : f32
    %14 = vector.broadcast %cst_7 : f32 to vector<16x128xf32>
    %15 = arith.mulf %13, %14 : vector<16x128xf32>
    %16 = arith.mulf %7, %15 : vector<16x128xf32>
    %c0_8 = arith.constant 0 : index
    %c0_9 = arith.constant 0 : index
    %17 = vector.load %arg4[%c0_8, %c0_9] : memref<16x128xf32, #tpu.memory_space<vmem>>, vector<16x128xf32>
    tpu.vector_store %arg4[%c0_8, %c0_9], %16 {strides = array<i32>} : memref<16x128xf32, #tpu.memory_space<vmem>>, vector<16x128xf32>,
    return
  }
  func.func @transform_0(%arg0: i32) -> (i32, i32) {
    %c0_i32 = arith.constant 0 : i32
    %c0_i32_0 = arith.constant 0 : i32
    return %arg0, %c0_i32 : i32, i32
  }
  func.func @transform_1(%arg0: i32) -> (i32, i32) {
    %c0_i32 = arith.constant 0 : i32
    %c0_i32_0 = arith.constant 0 : i32
    %c0_i32_1 = arith.constant 0 : i32
    return %c0_i32, %c0_i32_0 : i32, i32
  }
  func.func @transform_2(%arg0: i32) -> (i32, i32) {
    %c0_i32 = arith.constant 0 : i32
    %c0_i32_0 = arith.constant 0 : i32
    %c0_i32_1 = arith.constant 0 : i32
    return %c0_i32, %c0_i32_0 : i32, i32
  }
  func.func @transform_3(%arg0: i32) -> (i32, i32) {
    %c0_i32 = arith.constant 0 : i32
    %c0_i32_0 = arith.constant 0 : i32
    return %arg0, %c0_i32 : i32, i32
  }
}

module attributes {stable_mosaic.version = 11 : i64} {
  func.func @bn_act_apply_kernel(%arg0: i32, %arg1: memref<16x128xbf16, #tpu.memory_space<vmem>>, %arg2: memref<1x128xf32, #tpu.memory_space<vmem>>, %arg3: memref<1x128xf32, #tpu.memory_space<vmem>>, %arg4: memref<16x128xf32, #tpu.memory_space<vmem>>) attributes {dimension_semantics = [#tpu.dimension_semantics<parallel>], iteration_bounds = array<i64: 1>, scalar_prefetch = 0 : i64, scratch_operands = 0 : i64, tpu.core_type = #tpu.core_type<tc>, window_params = [{transform_indices = @transform_0, window_bounds = array<i64: 16, 128>}, {pipeline_mode = #tpu.pipeline_mode<synchronous>, transform_indices = @transform_1, window_bounds = array<i64: 1, 128>}, {pipeline_mode = #tpu.pipeline_mode<synchronous>, transform_indices = @transform_2, window_bounds = array<i64: 1, 128>}, {transform_indices = @transform_3, window_bounds = array<i64: 16, 128>}]} {
    %c0 = arith.constant 0 : index
    %c0_0 = arith.constant 0 : index
    %0 = vector.load %arg1[%c0, %c0_0] : memref<16x128xbf16, #tpu.memory_space<vmem>>, vector<16x128xbf16>
    %1 = arith.extf %0 : vector<16x128xbf16> to vector<16x128xf32>
    %c0_1 = arith.constant 0 : index
    %c0_2 = arith.constant 0 : index
    %2 = vector.load %arg2[%c0_1, %c0_2] : memref<1x128xf32, #tpu.memory_space<vmem>>, vector<1x128xf32>
    %3 = vector.broadcast %2 : vector<1x128xf32> to vector<16x128xf32>
    %4 = arith.mulf %1, %3 : vector<16x128xf32>
    %c0_3 = arith.constant 0 : index
    %c0_4 = arith.constant 0 : index
    %5 = vector.load %arg3[%c0_3, %c0_4] : memref<1x128xf32, #tpu.memory_space<vmem>>, vector<1x128xf32>
    %6 = vector.broadcast %5 : vector<1x128xf32> to vector<16x128xf32>
    %7 = arith.addf %4, %6 : vector<16x128xf32>
    %cst = arith.constant 0.000000e+00 : f32
    %8 = vector.broadcast %cst : f32 to vector<16x128xf32>
    %9 = arith.maximumf %7, %8 : vector<16x128xf32>
    %c0_5 = arith.constant 0 : index
    %c0_6 = arith.constant 0 : index
    %10 = vector.load %arg4[%c0_5, %c0_6] : memref<16x128xf32, #tpu.memory_space<vmem>>, vector<16x128xf32>
    tpu.vector_store %arg4[%c0_5, %c0_6], %9 {strides = array<i32>} : memref<16x128xf32, #tpu.memory_space<vmem>>, vector<16x128xf32>,
    return
  }
  func.func @transform_0(%arg0: i32) -> (i32, i32) {
    %c0_i32 = arith.constant 0 : i32
    %c0_i32_0 = arith.constant 0 : i32
    return %arg0, %c0_i32 : i32, i32
  }
  func.func @transform_1(%arg0: i32) -> (i32, i32) {
    %c0_i32 = arith.constant 0 : i32
    %c0_i32_0 = arith.constant 0 : i32
    %c0_i32_1 = arith.constant 0 : i32
    return %c0_i32, %c0_i32_0 : i32, i32
  }
  func.func @transform_2(%arg0: i32) -> (i32, i32) {
    %c0_i32 = arith.constant 0 : i32
    %c0_i32_0 = arith.constant 0 : i32
    %c0_i32_1 = arith.constant 0 : i32
    return %c0_i32, %c0_i32_0 : i32, i32
  }
  func.func @transform_3(%arg0: i32) -> (i32, i32) {
    %c0_i32 = arith.constant 0 : i32
    %c0_i32_0 = arith.constant 0 : i32
    return %arg0, %c0_i32 : i32, i32
  }
}

module attributes {stable_mosaic.version = 11 : i64} {
  func.func @dw_conv_stats_kernel(%arg0: i32, %arg1: memref<1x1x10x160xbf16, #tpu.memory_space<vmem>>, %arg2: memref<9x128xf32, #tpu.memory_space<vmem>>, %arg3: memref<1x8x128xbf16, #tpu.memory_space<vmem>>, %arg4: memref<1x2x128xf32, #tpu.memory_space<vmem>>) attributes {dimension_semantics = [#tpu.dimension_semantics<parallel>], iteration_bounds = array<i64: 2>, scalar_prefetch = 0 : i64, scratch_operands = 0 : i64, tpu.core_type = #tpu.core_type<tc>, window_params = [{transform_indices = @transform_0, window_bounds = array<i64: 1, 1, 10, 160>}, {pipeline_mode = #tpu.pipeline_mode<synchronous>, transform_indices = @transform_1, window_bounds = array<i64: 9, 128>}, {transform_indices = @transform_2, window_bounds = array<i64: 1, 8, 128>}, {transform_indices = @transform_3, window_bounds = array<i64: 1, 2, 128>}]} {
    %c0 = arith.constant 0 : index
    %c0_0 = arith.constant 0 : index
    %c0_1 = arith.constant 0 : index
    %c0_2 = arith.constant 0 : index
    %0 = vector.load %arg1[%c0, %c0_0, %c0_1, %c0_2] : memref<1x1x10x160xbf16, #tpu.memory_space<vmem>>, vector<1x1x10x160xbf16>
    %1 = vector.shape_cast %0 : vector<1x1x10x160xbf16> to vector<10x160xbf16>
    %2 = arith.extf %1 : vector<10x160xbf16> to vector<10x160xf32>
    %cst = arith.constant 0.000000e+00 : f32
    %3 = vector.broadcast %cst : f32 to vector<8x128xf32>
    %4 = vector.extract_strided_slice %2 {offsets = [0, 0], sizes = [8, 128], strides = [1, 1]} : vector<10x160xf32> to vector<8x128xf32>
    %c0_3 = arith.constant 0 : index
    %c0_4 = arith.constant 0 : index
    %5 = vector.load %arg2[%c0_3, %c0_4] : memref<9x128xf32, #tpu.memory_space<vmem>>, vector<1x128xf32>
    %6 = vector.broadcast %5 : vector<1x128xf32> to vector<8x128xf32>
    %7 = arith.mulf %4, %6 : vector<8x128xf32>
    %8 = arith.addf %3, %7 : vector<8x128xf32>
    %9 = vector.extract_strided_slice %2 {offsets = [0, 16], sizes = [8, 128], strides = [1, 1]} : vector<10x160xf32> to vector<8x128xf32>
    %c1 = arith.constant 1 : index
    %c0_5 = arith.constant 0 : index
    %10 = vector.load %arg2[%c1, %c0_5] : memref<9x128xf32, #tpu.memory_space<vmem>>, vector<1x128xf32>
    %11 = vector.broadcast %10 : vector<1x128xf32> to vector<8x128xf32>
    %12 = arith.mulf %9, %11 : vector<8x128xf32>
    %13 = arith.addf %8, %12 : vector<8x128xf32>
    %14 = vector.extract_strided_slice %2 {offsets = [0, 32], sizes = [8, 128], strides = [1, 1]} : vector<10x160xf32> to vector<8x128xf32>
    %c2 = arith.constant 2 : index
    %c0_6 = arith.constant 0 : index
    %15 = vector.load %arg2[%c2, %c0_6] : memref<9x128xf32, #tpu.memory_space<vmem>>, vector<1x128xf32>
    %16 = vector.broadcast %15 : vector<1x128xf32> to vector<8x128xf32>
    %17 = arith.mulf %14, %16 : vector<8x128xf32>
    %18 = arith.addf %13, %17 : vector<8x128xf32>
    %19 = vector.extract_strided_slice %2 {offsets = [1, 0], sizes = [8, 128], strides = [1, 1]} : vector<10x160xf32> to vector<8x128xf32>
    %c3 = arith.constant 3 : index
    %c0_7 = arith.constant 0 : index
    %20 = vector.load %arg2[%c3, %c0_7] : memref<9x128xf32, #tpu.memory_space<vmem>>, vector<1x128xf32>
    %21 = vector.broadcast %20 : vector<1x128xf32> to vector<8x128xf32>
    %22 = arith.mulf %19, %21 : vector<8x128xf32>
    %23 = arith.addf %18, %22 : vector<8x128xf32>
    %24 = vector.extract_strided_slice %2 {offsets = [1, 16], sizes = [8, 128], strides = [1, 1]} : vector<10x160xf32> to vector<8x128xf32>
    %c4 = arith.constant 4 : index
    %c0_8 = arith.constant 0 : index
    %25 = vector.load %arg2[%c4, %c0_8] : memref<9x128xf32, #tpu.memory_space<vmem>>, vector<1x128xf32>
    %26 = vector.broadcast %25 : vector<1x128xf32> to vector<8x128xf32>
    %27 = arith.mulf %24, %26 : vector<8x128xf32>
    %28 = arith.addf %23, %27 : vector<8x128xf32>
    %29 = vector.extract_strided_slice %2 {offsets = [1, 32], sizes = [8, 128], strides = [1, 1]} : vector<10x160xf32> to vector<8x128xf32>
    %c5 = arith.constant 5 : index
    %c0_9 = arith.constant 0 : index
    %30 = vector.load %arg2[%c5, %c0_9] : memref<9x128xf32, #tpu.memory_space<vmem>>, vector<1x128xf32>
    %31 = vector.broadcast %30 : vector<1x128xf32> to vector<8x128xf32>
    %32 = arith.mulf %29, %31 : vector<8x128xf32>
    %33 = arith.addf %28, %32 : vector<8x128xf32>
    %34 = vector.extract_strided_slice %2 {offsets = [2, 0], sizes = [8, 128], strides = [1, 1]} : vector<10x160xf32> to vector<8x128xf32>
    %c6 = arith.constant 6 : index
    %c0_10 = arith.constant 0 : index
    %35 = vector.load %arg2[%c6, %c0_10] : memref<9x128xf32, #tpu.memory_space<vmem>>, vector<1x128xf32>
    %36 = vector.broadcast %35 : vector<1x128xf32> to vector<8x128xf32>
    %37 = arith.mulf %34, %36 : vector<8x128xf32>
    %38 = arith.addf %33, %37 : vector<8x128xf32>
    %39 = vector.extract_strided_slice %2 {offsets = [2, 16], sizes = [8, 128], strides = [1, 1]} : vector<10x160xf32> to vector<8x128xf32>
    %c7 = arith.constant 7 : index
    %c0_11 = arith.constant 0 : index
    %40 = vector.load %arg2[%c7, %c0_11] : memref<9x128xf32, #tpu.memory_space<vmem>>, vector<1x128xf32>
    %41 = vector.broadcast %40 : vector<1x128xf32> to vector<8x128xf32>
    %42 = arith.mulf %39, %41 : vector<8x128xf32>
    %43 = arith.addf %38, %42 : vector<8x128xf32>
    %44 = vector.extract_strided_slice %2 {offsets = [2, 32], sizes = [8, 128], strides = [1, 1]} : vector<10x160xf32> to vector<8x128xf32>
    %c8 = arith.constant 8 : index
    %c0_12 = arith.constant 0 : index
    %45 = vector.load %arg2[%c8, %c0_12] : memref<9x128xf32, #tpu.memory_space<vmem>>, vector<1x128xf32>
    %46 = vector.broadcast %45 : vector<1x128xf32> to vector<8x128xf32>
    %47 = arith.mulf %44, %46 : vector<8x128xf32>
    %48 = arith.addf %43, %47 : vector<8x128xf32>
    %49 = arith.truncf %48 : vector<8x128xf32> to vector<8x128xbf16>
    %c0_13 = arith.constant 0 : index
    %c0_14 = arith.constant 0 : index
    %c0_15 = arith.constant 0 : index
    %50 = vector.load %arg3[%c0_13, %c0_14, %c0_15] : memref<1x8x128xbf16, #tpu.memory_space<vmem>>, vector<1x8x128xbf16>
    %51 = vector.shape_cast %50 : vector<1x8x128xbf16> to vector<8x128xbf16>
    %52 = vector.shape_cast %49 : vector<8x128xbf16> to vector<1x8x128xbf16>
    tpu.vector_store %arg3[%c0_13, %c0_14, %c0_15], %52 {strides = array<i32>} : memref<1x8x128xbf16, #tpu.memory_space<vmem>>, vector<1x8x128xbf16>,
    %cst_16 = arith.constant dense<0.000000e+00> : vector<128xf32>
    %53 = vector.multi_reduction <add>, %48, %cst_16 [0] : vector<8x128xf32> to vector<128xf32>
    %54 = vector.shape_cast %53 : vector<128xf32> to vector<1x128xf32>
    %55 = vector.shape_cast %54 : vector<1x128xf32> to vector<1x1x128xf32>
    %c0_17 = arith.constant 0 : index
    %c0_18 = arith.constant 0 : index
    %c0_19 = arith.constant 0 : index
    %56 = vector.load %arg4[%c0_17, %c0_18, %c0_19] : memref<1x2x128xf32, #tpu.memory_space<vmem>>, vector<1x1x128xf32>
    tpu.vector_store %arg4[%c0_17, %c0_18, %c0_19], %55 {strides = array<i32>} : memref<1x2x128xf32, #tpu.memory_space<vmem>>, vector<1x1x128xf32>,
    %57 = arith.mulf %48, %48 : vector<8x128xf32>
    %cst_20 = arith.constant dense<0.000000e+00> : vector<128xf32>
    %58 = vector.multi_reduction <add>, %57, %cst_20 [0] : vector<8x128xf32> to vector<128xf32>
    %59 = vector.shape_cast %58 : vector<128xf32> to vector<1x128xf32>
    %60 = vector.shape_cast %59 : vector<1x128xf32> to vector<1x1x128xf32>
    %c0_21 = arith.constant 0 : index
    %c1_22 = arith.constant 1 : index
    %c0_23 = arith.constant 0 : index
    %61 = vector.load %arg4[%c0_21, %c1_22, %c0_23] : memref<1x2x128xf32, #tpu.memory_space<vmem>>, vector<1x1x128xf32>
    tpu.vector_store %arg4[%c0_21, %c1_22, %c0_23], %60 {strides = array<i32>} : memref<1x2x128xf32, #tpu.memory_space<vmem>>, vector<1x1x128xf32>,
    return
  }
  func.func @transform_0(%arg0: i32) -> (i32, i32, i32, i32) {
    %c0_i32 = arith.constant 0 : i32
    %c0_i32_0 = arith.constant 0 : i32
    %c0_i32_1 = arith.constant 0 : i32
    %c0_i32_2 = arith.constant 0 : i32
    return %arg0, %c0_i32, %c0_i32_0, %c0_i32_1 : i32, i32, i32, i32
  }
  func.func @transform_1(%arg0: i32) -> (i32, i32) {
    %c0_i32 = arith.constant 0 : i32
    %c0_i32_0 = arith.constant 0 : i32
    %c0_i32_1 = arith.constant 0 : i32
    return %c0_i32, %c0_i32_0 : i32, i32
  }
  func.func @transform_2(%arg0: i32) -> (i32, i32, i32) {
    %c0_i32 = arith.constant 0 : i32
    %c0_i32_0 = arith.constant 0 : i32
    %c0_i32_1 = arith.constant 0 : i32
    return %arg0, %c0_i32, %c0_i32_0 : i32, i32, i32
  }
  func.func @transform_3(%arg0: i32) -> (i32, i32, i32) {
    %c0_i32 = arith.constant 0 : i32
    %c0_i32_0 = arith.constant 0 : i32
    %c0_i32_1 = arith.constant 0 : i32
    return %arg0, %c0_i32, %c0_i32_0 : i32, i32, i32
  }
}

module attributes {stable_mosaic.version = 11 : i64} {
  func.func @dw_conv_stats_kernel(%arg0: i32, %arg1: memref<1x4x6x96xbf16, #tpu.memory_space<vmem>>, %arg2: memref<25x64xf32, #tpu.memory_space<vmem>>, %arg3: memref<1x4x64xbf16, #tpu.memory_space<vmem>>, %arg4: memref<1x2x64xf32, #tpu.memory_space<vmem>>) attributes {dimension_semantics = [#tpu.dimension_semantics<parallel>], iteration_bounds = array<i64: 2>, scalar_prefetch = 0 : i64, scratch_operands = 0 : i64, tpu.core_type = #tpu.core_type<tc>, window_params = [{transform_indices = @transform_0, window_bounds = array<i64: 1, 4, 6, 96>}, {pipeline_mode = #tpu.pipeline_mode<synchronous>, transform_indices = @transform_1, window_bounds = array<i64: 25, 64>}, {transform_indices = @transform_2, window_bounds = array<i64: 1, 4, 64>}, {transform_indices = @transform_3, window_bounds = array<i64: 1, 2, 64>}]} {
    %c0 = arith.constant 0 : index
    %c0_0 = arith.constant 0 : index
    %c0_1 = arith.constant 0 : index
    %c0_2 = arith.constant 0 : index
    %0 = vector.load %arg1[%c0, %c0_0, %c0_1, %c0_2] : memref<1x4x6x96xbf16, #tpu.memory_space<vmem>>, vector<1x1x6x96xbf16>
    %1 = vector.shape_cast %0 : vector<1x1x6x96xbf16> to vector<6x96xbf16>
    %2 = arith.extf %1 : vector<6x96xbf16> to vector<6x96xf32>
    %c0_3 = arith.constant 0 : index
    %c1 = arith.constant 1 : index
    %c0_4 = arith.constant 0 : index
    %c0_5 = arith.constant 0 : index
    %3 = vector.load %arg1[%c0_3, %c1, %c0_4, %c0_5] : memref<1x4x6x96xbf16, #tpu.memory_space<vmem>>, vector<1x1x6x96xbf16>
    %4 = vector.shape_cast %3 : vector<1x1x6x96xbf16> to vector<6x96xbf16>
    %5 = arith.extf %4 : vector<6x96xbf16> to vector<6x96xf32>
    %c0_6 = arith.constant 0 : index
    %c2 = arith.constant 2 : index
    %c0_7 = arith.constant 0 : index
    %c0_8 = arith.constant 0 : index
    %6 = vector.load %arg1[%c0_6, %c2, %c0_7, %c0_8] : memref<1x4x6x96xbf16, #tpu.memory_space<vmem>>, vector<1x1x6x96xbf16>
    %7 = vector.shape_cast %6 : vector<1x1x6x96xbf16> to vector<6x96xbf16>
    %8 = arith.extf %7 : vector<6x96xbf16> to vector<6x96xf32>
    %c0_9 = arith.constant 0 : index
    %c3 = arith.constant 3 : index
    %c0_10 = arith.constant 0 : index
    %c0_11 = arith.constant 0 : index
    %9 = vector.load %arg1[%c0_9, %c3, %c0_10, %c0_11] : memref<1x4x6x96xbf16, #tpu.memory_space<vmem>>, vector<1x1x6x96xbf16>
    %10 = vector.shape_cast %9 : vector<1x1x6x96xbf16> to vector<6x96xbf16>
    %11 = arith.extf %10 : vector<6x96xbf16> to vector<6x96xf32>
    %cst = arith.constant 0.000000e+00 : f32
    %12 = vector.broadcast %cst : f32 to vector<4x64xf32>
    %13 = vector.extract_strided_slice %2 {offsets = [0, 0], sizes = [4, 64], strides = [1, 1]} : vector<6x96xf32> to vector<4x64xf32>
    %c0_12 = arith.constant 0 : index
    %c0_13 = arith.constant 0 : index
    %14 = vector.load %arg2[%c0_12, %c0_13] : memref<25x64xf32, #tpu.memory_space<vmem>>, vector<1x64xf32>
    %15 = vector.broadcast %14 : vector<1x64xf32> to vector<4x64xf32>
    %16 = arith.mulf %13, %15 : vector<4x64xf32>
    %17 = arith.addf %12, %16 : vector<4x64xf32>
    %18 = vector.extract_strided_slice %5 {offsets = [0, 0], sizes = [4, 64], strides = [1, 1]} : vector<6x96xf32> to vector<4x64xf32>
    %c1_14 = arith.constant 1 : index
    %c0_15 = arith.constant 0 : index
    %19 = vector.load %arg2[%c1_14, %c0_15] : memref<25x64xf32, #tpu.memory_space<vmem>>, vector<1x64xf32>
    %20 = vector.broadcast %19 : vector<1x64xf32> to vector<4x64xf32>
    %21 = arith.mulf %18, %20 : vector<4x64xf32>
    %22 = arith.addf %17, %21 : vector<4x64xf32>
    %23 = vector.extract_strided_slice %2 {offsets = [0, 16], sizes = [4, 64], strides = [1, 1]} : vector<6x96xf32> to vector<4x64xf32>
    %c2_16 = arith.constant 2 : index
    %c0_17 = arith.constant 0 : index
    %24 = vector.load %arg2[%c2_16, %c0_17] : memref<25x64xf32, #tpu.memory_space<vmem>>, vector<1x64xf32>
    %25 = vector.broadcast %24 : vector<1x64xf32> to vector<4x64xf32>
    %26 = arith.mulf %23, %25 : vector<4x64xf32>
    %27 = arith.addf %22, %26 : vector<4x64xf32>
    %28 = vector.extract_strided_slice %5 {offsets = [0, 16], sizes = [4, 64], strides = [1, 1]} : vector<6x96xf32> to vector<4x64xf32>
    %c3_18 = arith.constant 3 : index
    %c0_19 = arith.constant 0 : index
    %29 = vector.load %arg2[%c3_18, %c0_19] : memref<25x64xf32, #tpu.memory_space<vmem>>, vector<1x64xf32>
    %30 = vector.broadcast %29 : vector<1x64xf32> to vector<4x64xf32>
    %31 = arith.mulf %28, %30 : vector<4x64xf32>
    %32 = arith.addf %27, %31 : vector<4x64xf32>
    %33 = vector.extract_strided_slice %2 {offsets = [0, 32], sizes = [4, 64], strides = [1, 1]} : vector<6x96xf32> to vector<4x64xf32>
    %c4 = arith.constant 4 : index
    %c0_20 = arith.constant 0 : index
    %34 = vector.load %arg2[%c4, %c0_20] : memref<25x64xf32, #tpu.memory_space<vmem>>, vector<1x64xf32>
    %35 = vector.broadcast %34 : vector<1x64xf32> to vector<4x64xf32>
    %36 = arith.mulf %33, %35 : vector<4x64xf32>
    %37 = arith.addf %32, %36 : vector<4x64xf32>
    %38 = vector.extract_strided_slice %8 {offsets = [0, 0], sizes = [4, 64], strides = [1, 1]} : vector<6x96xf32> to vector<4x64xf32>
    %c5 = arith.constant 5 : index
    %c0_21 = arith.constant 0 : index
    %39 = vector.load %arg2[%c5, %c0_21] : memref<25x64xf32, #tpu.memory_space<vmem>>, vector<1x64xf32>
    %40 = vector.broadcast %39 : vector<1x64xf32> to vector<4x64xf32>
    %41 = arith.mulf %38, %40 : vector<4x64xf32>
    %42 = arith.addf %37, %41 : vector<4x64xf32>
    %43 = vector.extract_strided_slice %11 {offsets = [0, 0], sizes = [4, 64], strides = [1, 1]} : vector<6x96xf32> to vector<4x64xf32>
    %c6 = arith.constant 6 : index
    %c0_22 = arith.constant 0 : index
    %44 = vector.load %arg2[%c6, %c0_22] : memref<25x64xf32, #tpu.memory_space<vmem>>, vector<1x64xf32>
    %45 = vector.broadcast %44 : vector<1x64xf32> to vector<4x64xf32>
    %46 = arith.mulf %43, %45 : vector<4x64xf32>
    %47 = arith.addf %42, %46 : vector<4x64xf32>
    %48 = vector.extract_strided_slice %8 {offsets = [0, 16], sizes = [4, 64], strides = [1, 1]} : vector<6x96xf32> to vector<4x64xf32>
    %c7 = arith.constant 7 : index
    %c0_23 = arith.constant 0 : index
    %49 = vector.load %arg2[%c7, %c0_23] : memref<25x64xf32, #tpu.memory_space<vmem>>, vector<1x64xf32>
    %50 = vector.broadcast %49 : vector<1x64xf32> to vector<4x64xf32>
    %51 = arith.mulf %48, %50 : vector<4x64xf32>
    %52 = arith.addf %47, %51 : vector<4x64xf32>
    %53 = vector.extract_strided_slice %11 {offsets = [0, 16], sizes = [4, 64], strides = [1, 1]} : vector<6x96xf32> to vector<4x64xf32>
    %c8 = arith.constant 8 : index
    %c0_24 = arith.constant 0 : index
    %54 = vector.load %arg2[%c8, %c0_24] : memref<25x64xf32, #tpu.memory_space<vmem>>, vector<1x64xf32>
    %55 = vector.broadcast %54 : vector<1x64xf32> to vector<4x64xf32>
    %56 = arith.mulf %53, %55 : vector<4x64xf32>
    %57 = arith.addf %52, %56 : vector<4x64xf32>
    %58 = vector.extract_strided_slice %8 {offsets = [0, 32], sizes = [4, 64], strides = [1, 1]} : vector<6x96xf32> to vector<4x64xf32>
    %c9 = arith.constant 9 : index
    %c0_25 = arith.constant 0 : index
    %59 = vector.load %arg2[%c9, %c0_25] : memref<25x64xf32, #tpu.memory_space<vmem>>, vector<1x64xf32>
    %60 = vector.broadcast %59 : vector<1x64xf32> to vector<4x64xf32>
    %61 = arith.mulf %58, %60 : vector<4x64xf32>
    %62 = arith.addf %57, %61 : vector<4x64xf32>
    %63 = vector.extract_strided_slice %2 {offsets = [1, 0], sizes = [4, 64], strides = [1, 1]} : vector<6x96xf32> to vector<4x64xf32>
    %c10 = arith.constant 10 : index
    %c0_26 = arith.constant 0 : index
    %64 = vector.load %arg2[%c10, %c0_26] : memref<25x64xf32, #tpu.memory_space<vmem>>, vector<1x64xf32>
    %65 = vector.broadcast %64 : vector<1x64xf32> to vector<4x64xf32>
    %66 = arith.mulf %63, %65 : vector<4x64xf32>
    %67 = arith.addf %62, %66 : vector<4x64xf32>
    %68 = vector.extract_strided_slice %5 {offsets = [1, 0], sizes = [4, 64], strides = [1, 1]} : vector<6x96xf32> to vector<4x64xf32>
    %c11 = arith.constant 11 : index
    %c0_27 = arith.constant 0 : index
    %69 = vector.load %arg2[%c11, %c0_27] : memref<25x64xf32, #tpu.memory_space<vmem>>, vector<1x64xf32>
    %70 = vector.broadcast %69 : vector<1x64xf32> to vector<4x64xf32>
    %71 = arith.mulf %68, %70 : vector<4x64xf32>
    %72 = arith.addf %67, %71 : vector<4x64xf32>
    %73 = vector.extract_strided_slice %2 {offsets = [1, 16], sizes = [4, 64], strides = [1, 1]} : vector<6x96xf32> to vector<4x64xf32>
    %c12 = arith.constant 12 : index
    %c0_28 = arith.constant 0 : index
    %74 = vector.load %arg2[%c12, %c0_28] : memref<25x64xf32, #tpu.memory_space<vmem>>, vector<1x64xf32>
    %75 = vector.broadcast %74 : vector<1x64xf32> to vector<4x64xf32>
    %76 = arith.mulf %73, %75 : vector<4x64xf32>
    %77 = arith.addf %72, %76 : vector<4x64xf32>
    %78 = vector.extract_strided_slice %5 {offsets = [1, 16], sizes = [4, 64], strides = [1, 1]} : vector<6x96xf32> to vector<4x64xf32>
    %c13 = arith.constant 13 : index
    %c0_29 = arith.constant 0 : index
    %79 = vector.load %arg2[%c13, %c0_29] : memref<25x64xf32, #tpu.memory_space<vmem>>, vector<1x64xf32>
    %80 = vector.broadcast %79 : vector<1x64xf32> to vector<4x64xf32>
    %81 = arith.mulf %78, %80 : vector<4x64xf32>
    %82 = arith.addf %77, %81 : vector<4x64xf32>
    %83 = vector.extract_strided_slice %2 {offsets = [1, 32], sizes = [4, 64], strides = [1, 1]} : vector<6x96xf32> to vector<4x64xf32>
    %c14 = arith.constant 14 : index
    %c0_30 = arith.constant 0 : index
    %84 = vector.load %arg2[%c14, %c0_30] : memref<25x64xf32, #tpu.memory_space<vmem>>, vector<1x64xf32>
    %85 = vector.broadcast %84 : vector<1x64xf32> to vector<4x64xf32>
    %86 = arith.mulf %83, %85 : vector<4x64xf32>
    %87 = arith.addf %82, %86 : vector<4x64xf32>
    %88 = vector.extract_strided_slice %8 {offsets = [1, 0], sizes = [4, 64], strides = [1, 1]} : vector<6x96xf32> to vector<4x64xf32>
    %c15 = arith.constant 15 : index
    %c0_31 = arith.constant 0 : index
    %89 = vector.load %arg2[%c15, %c0_31] : memref<25x64xf32, #tpu.memory_space<vmem>>, vector<1x64xf32>
    %90 = vector.broadcast %89 : vector<1x64xf32> to vector<4x64xf32>
    %91 = arith.mulf %88, %90 : vector<4x64xf32>
    %92 = arith.addf %87, %91 : vector<4x64xf32>
    %93 = vector.extract_strided_slice %11 {offsets = [1, 0], sizes = [4, 64], strides = [1, 1]} : vector<6x96xf32> to vector<4x64xf32>
    %c16 = arith.constant 16 : index
    %c0_32 = arith.constant 0 : index
    %94 = vector.load %arg2[%c16, %c0_32] : memref<25x64xf32, #tpu.memory_space<vmem>>, vector<1x64xf32>
    %95 = vector.broadcast %94 : vector<1x64xf32> to vector<4x64xf32>
    %96 = arith.mulf %93, %95 : vector<4x64xf32>
    %97 = arith.addf %92, %96 : vector<4x64xf32>
    %98 = vector.extract_strided_slice %8 {offsets = [1, 16], sizes = [4, 64], strides = [1, 1]} : vector<6x96xf32> to vector<4x64xf32>
    %c17 = arith.constant 17 : index
    %c0_33 = arith.constant 0 : index
    %99 = vector.load %arg2[%c17, %c0_33] : memref<25x64xf32, #tpu.memory_space<vmem>>, vector<1x64xf32>
    %100 = vector.broadcast %99 : vector<1x64xf32> to vector<4x64xf32>
    %101 = arith.mulf %98, %100 : vector<4x64xf32>
    %102 = arith.addf %97, %101 : vector<4x64xf32>
    %103 = vector.extract_strided_slice %11 {offsets = [1, 16], sizes = [4, 64], strides = [1, 1]} : vector<6x96xf32> to vector<4x64xf32>
    %c18 = arith.constant 18 : index
    %c0_34 = arith.constant 0 : index
    %104 = vector.load %arg2[%c18, %c0_34] : memref<25x64xf32, #tpu.memory_space<vmem>>, vector<1x64xf32>
    %105 = vector.broadcast %104 : vector<1x64xf32> to vector<4x64xf32>
    %106 = arith.mulf %103, %105 : vector<4x64xf32>
    %107 = arith.addf %102, %106 : vector<4x64xf32>
    %108 = vector.extract_strided_slice %8 {offsets = [1, 32], sizes = [4, 64], strides = [1, 1]} : vector<6x96xf32> to vector<4x64xf32>
    %c19 = arith.constant 19 : index
    %c0_35 = arith.constant 0 : index
    %109 = vector.load %arg2[%c19, %c0_35] : memref<25x64xf32, #tpu.memory_space<vmem>>, vector<1x64xf32>
    %110 = vector.broadcast %109 : vector<1x64xf32> to vector<4x64xf32>
    %111 = arith.mulf %108, %110 : vector<4x64xf32>
    %112 = arith.addf %107, %111 : vector<4x64xf32>
    %113 = vector.extract_strided_slice %2 {offsets = [2, 0], sizes = [4, 64], strides = [1, 1]} : vector<6x96xf32> to vector<4x64xf32>
    %c20 = arith.constant 20 : index
    %c0_36 = arith.constant 0 : index
    %114 = vector.load %arg2[%c20, %c0_36] : memref<25x64xf32, #tpu.memory_space<vmem>>, vector<1x64xf32>
    %115 = vector.broadcast %114 : vector<1x64xf32> to vector<4x64xf32>
    %116 = arith.mulf %113, %115 : vector<4x64xf32>
    %117 = arith.addf %112, %116 : vector<4x64xf32>
    %118 = vector.extract_strided_slice %5 {offsets = [2, 0], sizes = [4, 64], strides = [1, 1]} : vector<6x96xf32> to vector<4x64xf32>
    %c21 = arith.constant 21 : index
    %c0_37 = arith.constant 0 : index
    %119 = vector.load %arg2[%c21, %c0_37] : memref<25x64xf32, #tpu.memory_space<vmem>>, vector<1x64xf32>
    %120 = vector.broadcast %119 : vector<1x64xf32> to vector<4x64xf32>
    %121 = arith.mulf %118, %120 : vector<4x64xf32>
    %122 = arith.addf %117, %121 : vector<4x64xf32>
    %123 = vector.extract_strided_slice %2 {offsets = [2, 16], sizes = [4, 64], strides = [1, 1]} : vector<6x96xf32> to vector<4x64xf32>
    %c22 = arith.constant 22 : index
    %c0_38 = arith.constant 0 : index
    %124 = vector.load %arg2[%c22, %c0_38] : memref<25x64xf32, #tpu.memory_space<vmem>>, vector<1x64xf32>
    %125 = vector.broadcast %124 : vector<1x64xf32> to vector<4x64xf32>
    %126 = arith.mulf %123, %125 : vector<4x64xf32>
    %127 = arith.addf %122, %126 : vector<4x64xf32>
    %128 = vector.extract_strided_slice %5 {offsets = [2, 16], sizes = [4, 64], strides = [1, 1]} : vector<6x96xf32> to vector<4x64xf32>
    %c23 = arith.constant 23 : index
    %c0_39 = arith.constant 0 : index
    %129 = vector.load %arg2[%c23, %c0_39] : memref<25x64xf32, #tpu.memory_space<vmem>>, vector<1x64xf32>
    %130 = vector.broadcast %129 : vector<1x64xf32> to vector<4x64xf32>
    %131 = arith.mulf %128, %130 : vector<4x64xf32>
    %132 = arith.addf %127, %131 : vector<4x64xf32>
    %133 = vector.extract_strided_slice %2 {offsets = [2, 32], sizes = [4, 64], strides = [1, 1]} : vector<6x96xf32> to vector<4x64xf32>
    %c24 = arith.constant 24 : index
    %c0_40 = arith.constant 0 : index
    %134 = vector.load %arg2[%c24, %c0_40] : memref<25x64xf32, #tpu.memory_space<vmem>>, vector<1x64xf32>
    %135 = vector.broadcast %134 : vector<1x64xf32> to vector<4x64xf32>
    %136 = arith.mulf %133, %135 : vector<4x64xf32>
    %137 = arith.addf %132, %136 : vector<4x64xf32>
    %138 = arith.truncf %137 : vector<4x64xf32> to vector<4x64xbf16>
    %c0_41 = arith.constant 0 : index
    %c0_42 = arith.constant 0 : index
    %c0_43 = arith.constant 0 : index
    %139 = vector.load %arg3[%c0_41, %c0_42, %c0_43] : memref<1x4x64xbf16, #tpu.memory_space<vmem>>, vector<1x4x64xbf16>
    %140 = vector.shape_cast %139 : vector<1x4x64xbf16> to vector<4x64xbf16>
    %141 = vector.shape_cast %138 : vector<4x64xbf16> to vector<1x4x64xbf16>
    tpu.vector_store %arg3[%c0_41, %c0_42, %c0_43], %141 {strides = array<i32>} : memref<1x4x64xbf16, #tpu.memory_space<vmem>>, vector<1x4x64xbf16>,
    %cst_44 = arith.constant dense<0.000000e+00> : vector<64xf32>
    %142 = vector.multi_reduction <add>, %137, %cst_44 [0] : vector<4x64xf32> to vector<64xf32>
    %143 = vector.shape_cast %142 : vector<64xf32> to vector<1x64xf32>
    %144 = vector.shape_cast %143 : vector<1x64xf32> to vector<1x1x64xf32>
    %c0_45 = arith.constant 0 : index
    %c0_46 = arith.constant 0 : index
    %c0_47 = arith.constant 0 : index
    %145 = vector.load %arg4[%c0_45, %c0_46, %c0_47] : memref<1x2x64xf32, #tpu.memory_space<vmem>>, vector<1x1x64xf32>
    tpu.vector_store %arg4[%c0_45, %c0_46, %c0_47], %144 {strides = array<i32>} : memref<1x2x64xf32, #tpu.memory_space<vmem>>, vector<1x1x64xf32>,
    %146 = arith.mulf %137, %137 : vector<4x64xf32>
    %cst_48 = arith.constant dense<0.000000e+00> : vector<64xf32>
    %147 = vector.multi_reduction <add>, %146, %cst_48 [0] : vector<4x64xf32> to vector<64xf32>
    %148 = vector.shape_cast %147 : vector<64xf32> to vector<1x64xf32>
    %149 = vector.shape_cast %148 : vector<1x64xf32> to vector<1x1x64xf32>
    %c0_49 = arith.constant 0 : index
    %c1_50 = arith.constant 1 : index
    %c0_51 = arith.constant 0 : index
    %150 = vector.load %arg4[%c0_49, %c1_50, %c0_51] : memref<1x2x64xf32, #tpu.memory_space<vmem>>, vector<1x1x64xf32>
    tpu.vector_store %arg4[%c0_49, %c1_50, %c0_51], %149 {strides = array<i32>} : memref<1x2x64xf32, #tpu.memory_space<vmem>>, vector<1x1x64xf32>,
    return
  }
  func.func @transform_0(%arg0: i32) -> (i32, i32, i32, i32) {
    %c0_i32 = arith.constant 0 : i32
    %c0_i32_0 = arith.constant 0 : i32
    %c0_i32_1 = arith.constant 0 : i32
    %c0_i32_2 = arith.constant 0 : i32
    return %arg0, %c0_i32, %c0_i32_0, %c0_i32_1 : i32, i32, i32, i32
  }
  func.func @transform_1(%arg0: i32) -> (i32, i32) {
    %c0_i32 = arith.constant 0 : i32
    %c0_i32_0 = arith.constant 0 : i32
    %c0_i32_1 = arith.constant 0 : i32
    return %c0_i32, %c0_i32_0 : i32, i32
  }
  func.func @transform_2(%arg0: i32) -> (i32, i32, i32) {
    %c0_i32 = arith.constant 0 : i32
    %c0_i32_0 = arith.constant 0 : i32
    %c0_i32_1 = arith.constant 0 : i32
    return %arg0, %c0_i32, %c0_i32_0 : i32, i32, i32
  }
  func.func @transform_3(%arg0: i32) -> (i32, i32, i32) {
    %c0_i32 = arith.constant 0 : i32
    %c0_i32_0 = arith.constant 0 : i32
    %c0_i32_1 = arith.constant 0 : i32
    return %arg0, %c0_i32, %c0_i32_0 : i32, i32, i32
  }
}

module attributes {stable_mosaic.version = 11 : i64} {
  func.func @bn_act_apply_kernel(%arg0: i32, %arg1: memref<16x64xbf16, #tpu.memory_space<vmem>>, %arg2: memref<1x64xf32, #tpu.memory_space<vmem>>, %arg3: memref<1x64xf32, #tpu.memory_space<vmem>>, %arg4: memref<16x64xf32, #tpu.memory_space<vmem>>) attributes {dimension_semantics = [#tpu.dimension_semantics<parallel>], iteration_bounds = array<i64: 1>, scalar_prefetch = 0 : i64, scratch_operands = 0 : i64, tpu.core_type = #tpu.core_type<tc>, window_params = [{transform_indices = @transform_0, window_bounds = array<i64: 16, 64>}, {pipeline_mode = #tpu.pipeline_mode<synchronous>, transform_indices = @transform_1, window_bounds = array<i64: 1, 64>}, {pipeline_mode = #tpu.pipeline_mode<synchronous>, transform_indices = @transform_2, window_bounds = array<i64: 1, 64>}, {transform_indices = @transform_3, window_bounds = array<i64: 16, 64>}]} {
    %c0 = arith.constant 0 : index
    %c0_0 = arith.constant 0 : index
    %0 = vector.load %arg1[%c0, %c0_0] : memref<16x64xbf16, #tpu.memory_space<vmem>>, vector<16x64xbf16>
    %1 = arith.extf %0 : vector<16x64xbf16> to vector<16x64xf32>
    %c0_1 = arith.constant 0 : index
    %c0_2 = arith.constant 0 : index
    %2 = vector.load %arg2[%c0_1, %c0_2] : memref<1x64xf32, #tpu.memory_space<vmem>>, vector<1x64xf32>
    %3 = vector.broadcast %2 : vector<1x64xf32> to vector<16x64xf32>
    %4 = arith.mulf %1, %3 : vector<16x64xf32>
    %c0_3 = arith.constant 0 : index
    %c0_4 = arith.constant 0 : index
    %5 = vector.load %arg3[%c0_3, %c0_4] : memref<1x64xf32, #tpu.memory_space<vmem>>, vector<1x64xf32>
    %6 = vector.broadcast %5 : vector<1x64xf32> to vector<16x64xf32>
    %7 = arith.addf %4, %6 : vector<16x64xf32>
    %cst = arith.constant 0.000000e+00 : f32
    %cst_5 = arith.constant 6.000000e+00 : f32
    %8 = vector.broadcast %cst : f32 to vector<16x64xf32>
    %9 = arith.maximumf %8, %7 : vector<16x64xf32>
    %10 = vector.broadcast %cst_5 : f32 to vector<16x64xf32>
    %11 = arith.minimumf %10, %9 : vector<16x64xf32>
    %c0_6 = arith.constant 0 : index
    %c0_7 = arith.constant 0 : index
    %12 = vector.load %arg4[%c0_6, %c0_7] : memref<16x64xf32, #tpu.memory_space<vmem>>, vector<16x64xf32>
    tpu.vector_store %arg4[%c0_6, %c0_7], %11 {strides = array<i32>} : memref<16x64xf32, #tpu.memory_space<vmem>>, vector<16x64xf32>,
    return
  }
  func.func @transform_0(%arg0: i32) -> (i32, i32) {
    %c0_i32 = arith.constant 0 : i32
    %c0_i32_0 = arith.constant 0 : i32
    return %arg0, %c0_i32 : i32, i32
  }
  func.func @transform_1(%arg0: i32) -> (i32, i32) {
    %c0_i32 = arith.constant 0 : i32
    %c0_i32_0 = arith.constant 0 : i32
    %c0_i32_1 = arith.constant 0 : i32
    return %c0_i32, %c0_i32_0 : i32, i32
  }
  func.func @transform_2(%arg0: i32) -> (i32, i32) {
    %c0_i32 = arith.constant 0 : i32
    %c0_i32_0 = arith.constant 0 : i32
    %c0_i32_1 = arith.constant 0 : i32
    return %c0_i32, %c0_i32_0 : i32, i32
  }
  func.func @transform_3(%arg0: i32) -> (i32, i32) {
    %c0_i32 = arith.constant 0 : i32
    %c0_i32_0 = arith.constant 0 : i32
    return %arg0, %c0_i32 : i32, i32
  }
}

module attributes {stable_mosaic.version = 11 : i64} {
  func.func @matmul_stats_kernel(%arg0: i32, %arg1: memref<16x64xbf16, #tpu.memory_space<vmem>>, %arg2: memref<64x128xbf16, #tpu.memory_space<vmem>>, %arg3: memref<16x128xbf16, #tpu.memory_space<vmem>>, %arg4: memref<1x2x128xf32, #tpu.memory_space<vmem>>) attributes {dimension_semantics = [#tpu.dimension_semantics<parallel>], iteration_bounds = array<i64: 1>, scalar_prefetch = 0 : i64, scratch_operands = 0 : i64, tpu.core_type = #tpu.core_type<tc>, window_params = [{transform_indices = @transform_0, window_bounds = array<i64: 16, 64>}, {pipeline_mode = #tpu.pipeline_mode<synchronous>, transform_indices = @transform_1, window_bounds = array<i64: 64, 128>}, {transform_indices = @transform_2, window_bounds = array<i64: 16, 128>}, {transform_indices = @transform_3, window_bounds = array<i64: 1, 2, 128>}]} {
    %c0 = arith.constant 0 : index
    %c0_0 = arith.constant 0 : index
    %0 = vector.load %arg1[%c0, %c0_0] : memref<16x64xbf16, #tpu.memory_space<vmem>>, vector<16x64xbf16>
    %c0_1 = arith.constant 0 : index
    %c0_2 = arith.constant 0 : index
    %1 = vector.load %arg2[%c0_1, %c0_2] : memref<64x128xbf16, #tpu.memory_space<vmem>>, vector<64x128xbf16>
    %cst = arith.constant dense<0.000000e+00> : vector<16x128xf32>
    %2 = tpu.matmul %0, %1, %cst {dimension_numbers = #tpu.dot_dimension_numbers<[1], [0], [0], [1], [0, 0, 1, 1], [], []>} : vector<16x64xbf16>, vector<64x128xbf16>, vector<16x128xf32> -> vector<16x128xf32>
    %3 = arith.truncf %2 : vector<16x128xf32> to vector<16x128xbf16>
    %c0_3 = arith.constant 0 : index
    %c0_4 = arith.constant 0 : index
    %4 = vector.load %arg3[%c0_3, %c0_4] : memref<16x128xbf16, #tpu.memory_space<vmem>>, vector<16x128xbf16>
    tpu.vector_store %arg3[%c0_3, %c0_4], %3 {strides = array<i32>} : memref<16x128xbf16, #tpu.memory_space<vmem>>, vector<16x128xbf16>,
    %cst_5 = arith.constant dense<0.000000e+00> : vector<128xf32>
    %5 = vector.multi_reduction <add>, %2, %cst_5 [0] : vector<16x128xf32> to vector<128xf32>
    %6 = vector.shape_cast %5 : vector<128xf32> to vector<1x128xf32>
    %7 = vector.shape_cast %6 : vector<1x128xf32> to vector<1x1x128xf32>
    %c0_6 = arith.constant 0 : index
    %c0_7 = arith.constant 0 : index
    %c0_8 = arith.constant 0 : index
    %8 = vector.load %arg4[%c0_6, %c0_7, %c0_8] : memref<1x2x128xf32, #tpu.memory_space<vmem>>, vector<1x1x128xf32>
    tpu.vector_store %arg4[%c0_6, %c0_7, %c0_8], %7 {strides = array<i32>} : memref<1x2x128xf32, #tpu.memory_space<vmem>>, vector<1x1x128xf32>,
    %9 = arith.mulf %2, %2 : vector<16x128xf32>
    %cst_9 = arith.constant dense<0.000000e+00> : vector<128xf32>
    %10 = vector.multi_reduction <add>, %9, %cst_9 [0] : vector<16x128xf32> to vector<128xf32>
    %11 = vector.shape_cast %10 : vector<128xf32> to vector<1x128xf32>
    %12 = vector.shape_cast %11 : vector<1x128xf32> to vector<1x1x128xf32>
    %c0_10 = arith.constant 0 : index
    %c1 = arith.constant 1 : index
    %c0_11 = arith.constant 0 : index
    %13 = vector.load %arg4[%c0_10, %c1, %c0_11] : memref<1x2x128xf32, #tpu.memory_space<vmem>>, vector<1x1x128xf32>
    tpu.vector_store %arg4[%c0_10, %c1, %c0_11], %12 {strides = array<i32>} : memref<1x2x128xf32, #tpu.memory_space<vmem>>, vector<1x1x128xf32>,
    return
  }
  func.func @transform_0(%arg0: i32) -> (i32, i32) {
    %c0_i32 = arith.constant 0 : i32
    %c0_i32_0 = arith.constant 0 : i32
    return %arg0, %c0_i32 : i32, i32
  }
  func.func @transform_1(%arg0: i32) -> (i32, i32) {
    %c0_i32 = arith.constant 0 : i32
    %c0_i32_0 = arith.constant 0 : i32
    %c0_i32_1 = arith.constant 0 : i32
    return %c0_i32, %c0_i32_0 : i32, i32
  }
  func.func @transform_2(%arg0: i32) -> (i32, i32) {
    %c0_i32 = arith.constant 0 : i32
    %c0_i32_0 = arith.constant 0 : i32
    return %arg0, %c0_i32 : i32, i32
  }
  func.func @transform_3(%arg0: i32) -> (i32, i32, i32) {
    %c0_i32 = arith.constant 0 : i32
    %c0_i32_0 = arith.constant 0 : i32
    %c0_i32_1 = arith.constant 0 : i32
    return %arg0, %c0_i32, %c0_i32_0 : i32, i32, i32
  }
}

module attributes {stable_mosaic.version = 11 : i64} {
  func.func @bn_act_apply_kernel(%arg0: i32, %arg1: memref<16x128xbf16, #tpu.memory_space<vmem>>, %arg2: memref<1x128xf32, #tpu.memory_space<vmem>>, %arg3: memref<1x128xf32, #tpu.memory_space<vmem>>, %arg4: memref<16x128xf32, #tpu.memory_space<vmem>>) attributes {dimension_semantics = [#tpu.dimension_semantics<parallel>], iteration_bounds = array<i64: 1>, scalar_prefetch = 0 : i64, scratch_operands = 0 : i64, tpu.core_type = #tpu.core_type<tc>, window_params = [{transform_indices = @transform_0, window_bounds = array<i64: 16, 128>}, {pipeline_mode = #tpu.pipeline_mode<synchronous>, transform_indices = @transform_1, window_bounds = array<i64: 1, 128>}, {pipeline_mode = #tpu.pipeline_mode<synchronous>, transform_indices = @transform_2, window_bounds = array<i64: 1, 128>}, {transform_indices = @transform_3, window_bounds = array<i64: 16, 128>}]} {
    %c0 = arith.constant 0 : index
    %c0_0 = arith.constant 0 : index
    %0 = vector.load %arg1[%c0, %c0_0] : memref<16x128xbf16, #tpu.memory_space<vmem>>, vector<16x128xbf16>
    %1 = arith.extf %0 : vector<16x128xbf16> to vector<16x128xf32>
    %c0_1 = arith.constant 0 : index
    %c0_2 = arith.constant 0 : index
    %2 = vector.load %arg2[%c0_1, %c0_2] : memref<1x128xf32, #tpu.memory_space<vmem>>, vector<1x128xf32>
    %3 = vector.broadcast %2 : vector<1x128xf32> to vector<16x128xf32>
    %4 = arith.mulf %1, %3 : vector<16x128xf32>
    %c0_3 = arith.constant 0 : index
    %c0_4 = arith.constant 0 : index
    %5 = vector.load %arg3[%c0_3, %c0_4] : memref<1x128xf32, #tpu.memory_space<vmem>>, vector<1x128xf32>
    %6 = vector.broadcast %5 : vector<1x128xf32> to vector<16x128xf32>
    %7 = arith.addf %4, %6 : vector<16x128xf32>
    %c0_5 = arith.constant 0 : index
    %c0_6 = arith.constant 0 : index
    %8 = vector.load %arg4[%c0_5, %c0_6] : memref<16x128xf32, #tpu.memory_space<vmem>>, vector<16x128xf32>
    tpu.vector_store %arg4[%c0_5, %c0_6], %7 {strides = array<i32>} : memref<16x128xf32, #tpu.memory_space<vmem>>, vector<16x128xf32>,
    return
  }
  func.func @transform_0(%arg0: i32) -> (i32, i32) {
    %c0_i32 = arith.constant 0 : i32
    %c0_i32_0 = arith.constant 0 : i32
    return %arg0, %c0_i32 : i32, i32
  }
  func.func @transform_1(%arg0: i32) -> (i32, i32) {
    %c0_i32 = arith.constant 0 : i32
    %c0_i32_0 = arith.constant 0 : i32
    %c0_i32_1 = arith.constant 0 : i32
    return %c0_i32, %c0_i32_0 : i32, i32
  }
  func.func @transform_2(%arg0: i32) -> (i32, i32) {
    %c0_i32 = arith.constant 0 : i32
    %c0_i32_0 = arith.constant 0 : i32
    %c0_i32_1 = arith.constant 0 : i32
    return %c0_i32, %c0_i32_0 : i32, i32
  }
  func.func @transform_3(%arg0: i32) -> (i32, i32) {
    %c0_i32 = arith.constant 0 : i32
    %c0_i32_0 = arith.constant 0 : i32
    return %arg0, %c0_i32 : i32, i32
  }
}

</mosaic_0001>

<llo_original>
// kernel: tile.51
$region0: #{tile.51}
  #allocation0 [shape = 's32[1]{0}', space=sflag, size = 0x4, scoped, tag = 'scoped memory for tile.51']
  %s0 = inlined_call_operand.vmem [shape: f32[16], index: 0, kind: input, shape index: {}]
  %s1 = inlined_call_operand.vmem [shape: f32[8,16], index: 1, kind: output, shape index: {}]
  // Predicated region
  $region2: #{tile.51} parent=0 // pred_check
    _
  $region3: #{tile.51} parent=0 // pred_check_branch
    %3 = sbr.rel (0) target = $region5
  $region4: #{tile.51} parent=0 // pred_region
    _
  $region5: #{tile.51} parent=0 // pred_fallthru
    _
  %v4 = vld [vmem:[%s0] ss:$0 sm:$0xff]
  %5 = vst [vmem:[%s1] sm:$0xff] %v4

// kernel: tile.52
$region0: #{tile.52}
  %s0 = inlined_call_operand.vmem [shape: f32[8,16], index: 0, kind: input, shape index: {}]
  %s1 = inlined_call_operand.vmem [shape: f32[1,128], index: 1, kind: output, shape index: {}]
  $region1: #{tile.52} parent=0
    #allocation0 [shape = 'u8[4096]{0}', space=vmem, size = 0x1000, scoped, tag = 'scoped mem for output reshape']
    %v2 = vld [vmem:[%s0] sm:$0x1]
    %vm3 = vcmask 130048
    %4 = vst.msk [vmem:[#allocation0] sm:$0x1] %vm3, %v2
    %s5 = scalar_lea.vmem %s0, 7
    %v6 = vld [vmem:[%s5] sm:$0x1]
    %7 = vrot.lane.b32.xlu0 %v6, 112
    %v8 = vpop.permute.xlu0 %7
    %vm9 = vcmask 1048448
    %10 = vst.msk [vmem:[#allocation0] sm:$0x1] %vm9, %v8
    %s11 = scalar_lea.vmem %s0, 6
    %v12 = vld [vmem:[%s11] sm:$0x1]
    %13 = vrot.lane.b32.xlu0 %v12, 96
    %v14 = vpop.permute.xlu0 %13
    %vm15 = vcmask 917248
    %16 = vst.msk [vmem:[#allocation0] sm:$0x1] %vm15, %v14
    %s17 = scalar_lea.vmem %s0, 5
    %v18 = vld [vmem:[%s17] sm:$0x1]
    %19 = vrot.lane.b32.xlu0 %v18, 80
    %v20 = vpop.permute.xlu0 %19
    %vm21 = vcmask 786048
    %22 = vst.msk [vmem:[#allocation0] sm:$0x1] %vm21, %v20
    %s23 = scalar_lea.vmem %s0, 4
    %v24 = vld [vmem:[%s23] sm:$0x1]
    %25 = vrot.lane.b32.xlu0 %v24, 64
    %v26 = vpop.permute.xlu0 %25
    %vm27 = vcmask 654848
    %28 = vst.msk [vmem:[#allocation0] sm:$0x1] %vm27, %v26
    %s29 = scalar_lea.vmem %s0, 3
    %v30 = vld [vmem:[%s29] sm:$0x1]
    %31 = vrot.lane.b32.xlu0 %v30, 48
    %v32 = vpop.permute.xlu0 %31
    %vm33 = vcmask 523648
    %34 = vst.msk [vmem:[#allocation0] sm:$0x1] %vm33, %v32
    %s35 = scalar_lea.vmem %s0, 2
    %v36 = vld [vmem:[%s35] sm:$0x1]
    %37 = vrot.lane.b32.xlu0 %v36, 32
    %v38 = vpop.permute.xlu0 %37
    %vm39 = vcmask 392448
    %40 = vst.msk [vmem:[#allocation0] sm:$0x1] %vm39, %v38
    %s41 = scalar_lea.vmem %s0, 1
    %v42 = vld [vmem:[%s41] sm:$0x1]
    %43 = vrot.lane.b32.xlu0 %v42, 16
    %v44 = vpop.permute.xlu0 %43
    %vm45 = vcmask 261248
    %46 = vst.msk [vmem:[#allocation0] sm:$0x1] %vm45, %v44
    %s48 = sshllo.u32 0, 1
    %v50 = vld [vmem:[#allocation0] sm:%s48]
    %s51 = sshllo.u32 0, 1
    %52 = vst [vmem:[%s1] sm:%s51] %v50

// kernel: tile.61
$region0: #{tile.61}
  %s0 = inlined_call_operand.vmem [shape: f32[9,8,16], index: 0, kind: input, shape index: {}]
  %s1 = inlined_call_operand.vmem [shape: f32[9,128], index: 1, kind: output, shape index: {}]
  %v2 = vld [vmem:[%s0] ss:$8 sm:$0xf]
  %v3 = vld [vmem:[%s0] ss:$8 sm:$0xf0]
  %vm4 = vcmask 1047556
  %v5 = vsel %vm4, %v3, %v2
  %vm6 = vcmask 130048
  %7 = vst.msk [vmem:[%s1] sm:$0xff] %vm6, %v5
  %s8 = scalar_lea.vmem %s0, 64
  %v9 = vld [vmem:[%s8] sm:$0x1]
  %vm10 = vcmask 130048
  %s11 = scalar_lea.vmem %s1, 8
  %12 = vst.msk [vmem:[%s11] sm:$0x1] %vm10, %v9
  %s13 = scalar_lea.vmem %s0, 7
  %v14 = vld [vmem:[%s13] ss:$8 sm:$0xf]
  %s15 = scalar_lea.vmem %s0, 7
  %v16 = vld [vmem:[%s15] ss:$8 sm:$0xf0]
  %vm17 = vcmask 1047556
  %v18 = vsel %vm17, %v16, %v14
  %19 = vrot.lane.b32.xlu0 %v18, 112
  %v20 = vpop.permute.xlu0 %19
  %vm21 = vcmask 1048448
  %22 = vst.msk [vmem:[%s1] sm:$0xff] %vm21, %v20
  %s23 = scalar_lea.vmem %s0, 71
  %v24 = vld [vmem:[%s23] sm:$0x1]
  %25 = vrot.lane.b32.xlu0 %v24, 112
  %v26 = vpop.permute.xlu0 %25
  %vm27 = vcmask 1048448
  %s28 = scalar_lea.vmem %s1, 8
  %29 = vst.msk [vmem:[%s28] sm:$0x1] %vm27, %v26
  %s30 = scalar_lea.vmem %s0, 6
  %v31 = vld [vmem:[%s30] ss:$8 sm:$0xf]
  %s32 = scalar_lea.vmem %s0, 6
  %v33 = vld [vmem:[%s32] ss:$8 sm:$0xf0]
  %vm34 = vcmask 1047556
  %v35 = vsel %vm34, %v33, %v31
  %36 = vrot.lane.b32.xlu0 %v35, 96
  %v37 = vpop.permute.xlu0 %36
  %vm38 = vcmask 917248
  %39 = vst.msk [vmem:[%s1] sm:$0xff] %vm38, %v37
  %s40 = scalar_lea.vmem %s0, 70
  %v41 = vld [vmem:[%s40] sm:$0x1]
  %42 = vrot.lane.b32.xlu0 %v41, 96
  %v43 = vpop.permute.xlu0 %42
  %vm44 = vcmask 917248
  %s45 = scalar_lea.vmem %s1, 8
  %46 = vst.msk [vmem:[%s45] sm:$0x1] %vm44, %v43
  %s47 = scalar_lea.vmem %s0, 5
  %v48 = vld [vmem:[%s47] ss:$8 sm:$0xf]
  %s49 = scalar_lea.vmem %s0, 5
  %v50 = vld [vmem:[%s49] ss:$8 sm:$0xf0]
  %vm51 = vcmask 1047556
  %v52 = vsel %vm51, %v50, %v48
  %53 = vrot.lane.b32.xlu0 %v52, 80
  %v54 = vpop.permute.xlu0 %53
  %vm55 = vcmask 786048
  %56 = vst.msk [vmem:[%s1] sm:$0xff] %vm55, %v54
  %s57 = scalar_lea.vmem %s0, 69
  %v58 = vld [vmem:[%s57] sm:$0x1]
  %59 = vrot.lane.b32.xlu0 %v58, 80
  %v60 = vpop.permute.xlu0 %59
  %vm61 = vcmask 786048
  %s62 = scalar_lea.vmem %s1, 8
  %63 = vst.msk [vmem:[%s62] sm:$0x1] %vm61, %v60
  %s64 = scalar_lea.vmem %s0, 4
  %v65 = vld [vmem:[%s64] ss:$8 sm:$0xf]
  %s66 = scalar_lea.vmem %s0, 4
  %v67 = vld [vmem:[%s66] ss:$8 sm:$0xf0]
  %vm68 = vcmask 1047556
  %v69 = vsel %vm68, %v67, %v65
  %70 = vrot.lane.b32.xlu0 %v69, 64
  %v71 = vpop.permute.xlu0 %70
  %vm72 = vcmask 654848
  %73 = vst.msk [vmem:[%s1] sm:$0xff] %vm72, %v71
  %s74 = scalar_lea.vmem %s0, 68
  %v75 = vld [vmem:[%s74] sm:$0x1]
  %76 = vrot.lane.b32.xlu0 %v75, 64
  %v77 = vpop.permute.xlu0 %76
  %vm78 = vcmask 654848
  %s79 = scalar_lea.vmem %s1, 8
  %80 = vst.msk [vmem:[%s79] sm:$0x1] %vm78, %v77
  %s81 = scalar_lea.vmem %s0, 3
  %v82 = vld [vmem:[%s81] ss:$8 sm:$0xf]
  %s83 = scalar_lea.vmem %s0, 3
  %v84 = vld [vmem:[%s83] ss:$8 sm:$0xf0]
  %vm85 = vcmask 1047556
  %v86 = vsel %vm85, %v84, %v82
  %87 = vrot.lane.b32.xlu0 %v86, 48
  %v88 = vpop.permute.xlu0 %87
  %vm89 = vcmask 523648
  %90 = vst.msk [vmem:[%s1] sm:$0xff] %vm89, %v88
  %s91 = scalar_lea.vmem %s0, 67
  %v92 = vld [vmem:[%s91] sm:$0x1]
  %93 = vrot.lane.b32.xlu0 %v92, 48
  %v94 = vpop.permute.xlu0 %93
  %vm95 = vcmask 523648
  %s96 = scalar_lea.vmem %s1, 8
  %97 = vst.msk [vmem:[%s96] sm:$0x1] %vm95, %v94
  %s98 = scalar_lea.vmem %s0, 2
  %v99 = vld [vmem:[%s98] ss:$8 sm:$0xf]
  %s100 = scalar_lea.vmem %s0, 2
  %v101 = vld [vmem:[%s100] ss:$8 sm:$0xf0]
  %vm102 = vcmask 1047556
  %v103 = vsel %vm102, %v101, %v99
  %104 = vrot.lane.b32.xlu0 %v103, 32
  %v105 = vpop.permute.xlu0 %104
  %vm106 = vcmask 392448
  %107 = vst.msk [vmem:[%s1] sm:$0xff] %vm106, %v105
  %s108 = scalar_lea.vmem %s0, 66
  %v109 = vld [vmem:[%s108] sm:$0x1]
  %110 = vrot.lane.b32.xlu0 %v109, 32
  %v111 = vpop.permute.xlu0 %110
  %vm112 = vcmask 392448
  %s113 = scalar_lea.vmem %s1, 8
  %114 = vst.msk [vmem:[%s113] sm:$0x1] %vm112, %v111
  %s115 = scalar_lea.vmem %s0, 1
  %v116 = vld [vmem:[%s115] ss:$8 sm:$0xf]
  %s117 = scalar_lea.vmem %s0, 1
  %v118 = vld [vmem:[%s117] ss:$8 sm:$0xf0]
  %vm119 = vcmask 1047556
  %v120 = vsel %vm119, %v118, %v116
  %121 = vrot.lane.b32.xlu0 %v120, 16
  %v122 = vpop.permute.xlu0 %121
  %vm123 = vcmask 261248
  %124 = vst.msk [vmem:[%s1] sm:$0xff] %vm123, %v122
  %s125 = scalar_lea.vmem %s0, 65
  %v126 = vld [vmem:[%s125] sm:$0x1]
  %127 = vrot.lane.b32.xlu0 %v126, 16
  %v128 = vpop.permute.xlu0 %127
  %vm129 = vcmask 261248
  %s130 = scalar_lea.vmem %s1, 8
  %131 = vst.msk [vmem:[%s130] sm:$0x1] %vm129, %v128

// kernel: forward.9
$region0: #{forward.9}
  #allocation0 [shape = 'u32[]', space=smem, size = 0x4, offset = 0x4, fixed_abs, tag = 'smem constant byte address 0x4 - core index']
  #allocation1 [shape = 'u32[144,128]{1,0:T(1,128)}', space=vmem, size = 0x12000, scoped, tag = 'internal scratch']
  %s0 = inlined_call_operand.vmem [shape: bf16[16,128], index: 0, kind: input, shape index: {}]
  %s1 = inlined_call_operand.vmem [shape: f32[1,128], index: 1, kind: input, shape index: {}]
  %s2 = inlined_call_operand.vmem [shape: f32[1,128], index: 2, kind: input, shape index: {}]
  %s3 = inlined_call_operand.vmem [shape: f32[16,128], index: 3, kind: output, shape index: {}]
  %s4 = sld [smem:[#allocation0]]
  $region22: #{forward.9} parent=0
    _
  %s6 = ssub.s32 1, %s4
  %s7 = scalar_select 0, %s6, %s4
  // Predicated region
  $region2: #{forward.9} parent=0 // pred_check
    _
  $region3: #{forward.9} parent=0 // pred_check_branch
    %9 = sbr.rel (0) target = $region5
  $region4: #{forward.9} parent=0 // pred_region
    _
  $region5: #{forward.9} parent=0 // pred_fallthru
    _
  // Predicated region
  $region6: #{forward.9} parent=0 // pred_check
    _
  $region7: #{forward.9} parent=0 // pred_check_branch
    %11 = sbr.rel (0) target = $region9
  $region8: #{forward.9} parent=0 // pred_region
    _
  $region9: #{forward.9} parent=0 // pred_fallthru
    _
  // Predicated region
  $region10: #{forward.9} parent=0 // pred_check
    _
  $region11: #{forward.9} parent=0 // pred_check_branch
    %13 = sbr.rel (0) target = $region13
  $region12: #{forward.9} parent=0 // pred_region
    _
  $region13: #{forward.9} parent=0 // pred_fallthru
    _
  %v14 = vld [vmem:[%s0] sm:$0xf]
  %v15 = vld [vmem:[%s0 + $0x4] sm:$0xf]
  %v16 = vunpack.c.l.bf16 %v14
  %v17 = vunpack.c.l.bf16 %v15
  %v18 = vld [vmem:[%s1] sm:$0x1]
  %v20 = vlaneseq
  %v21 = vshrl.u32 %v20, 7
  %v22 = vsub.s32 0, %v21
  %v23 = vrot.slane %v18, %v22
  %v25 = vmul.f32 %v16, %v23
  %v26 = vmul.f32 %v17, %v23
  %v27 = vld [vmem:[%s2] sm:$0x1]
  %v29 = vlaneseq
  %v30 = vshrl.u32 %v29, 7
  %v31 = vsub.s32 0, %v30
  %v32 = vrot.slane %v27, %v31
  %v34 = vadd.f32 %v25, %v32
  %v35 = vadd.f32 %v26, %v32
  %v36 = vadd.f32 %v34, 3.0
  %v37 = vadd.f32 %v35, 3.0
  %v38 = vmax.f32 %v36, 0.0
  %v39 = vmax.f32 %v37, 0.0
  %v40 = vmin.f32 %v38, 6.0
  %v41 = vmin.f32 %v39, 6.0
  %v42 = vmul.f32 %v40, 0.16666667
  %v43 = vmul.f32 %v41, 0.16666667
  %v44 = vmul.f32 %v34, %v42
  %v45 = vmul.f32 %v35, %v43
  %46 = vst [vmem:[%s3] sm:$0xff] %v44
  %47 = vst [vmem:[%s3 + $0x8] sm:$0xff] %v45
  // Predicated region
  $region14: #{forward.9} parent=0 // pred_check
    _
  $region15: #{forward.9} parent=0 // pred_check_branch
    %49 = sbr.rel (0) target = $region17
  $region16: #{forward.9} parent=0 // pred_region
    _
  $region17: #{forward.9} parent=0 // pred_fallthru
    _
  // Predicated region
  $region18: #{forward.9} parent=0 // pred_check
    _
  $region19: #{forward.9} parent=0 // pred_check_branch
    %51 = sbr.rel (0) target = $region21
  $region20: #{forward.9} parent=0 // pred_region
    _
  $region21: #{forward.9} parent=0 // pred_fallthru
    _

// kernel: forward.8
$region0: #{forward.8}
  #allocation0 [shape = 'u32[]', space=smem, size = 0x4, offset = 0x4, fixed_abs, tag = 'smem constant byte address 0x4 - core index']
  #allocation1 [shape = 'u32[144,128]{1,0:T(1,128)}', space=vmem, size = 0x12000, scoped, tag = 'internal scratch']
  %s0 = inlined_call_operand.vmem [shape: bf16[16,288], index: 0, kind: input, shape index: {}]
  %s1 = inlined_call_operand.vmem [shape: bf16[288,128], index: 1, kind: input, shape index: {}]
  %s2 = inlined_call_operand.vmem [shape: bf16[16,128], index: 2, kind: output, shape index: {0}]
  %s3 = inlined_call_operand.vmem [shape: f32[1,2,128], index: 3, kind: output, shape index: {1}]
  %4 = xla_tuple %s2, %s3
  %s5 = sld [smem:[#allocation0]]
  $region26: #{forward.8} parent=0
    _
  %s7 = ssub.s32 1, %s5
  %s8 = scalar_select 0, %s7, %s5
  // Predicated region
  $region2: #{forward.8} parent=0 // pred_check
    _
  $region3: #{forward.8} parent=0 // pred_check_branch
    %10 = sbr.rel (0) target = $region5
  $region4: #{forward.8} parent=0 // pred_region
    _
  $region5: #{forward.8} parent=0 // pred_fallthru
    _
  // Predicated region
  $region6: #{forward.8} parent=0 // pred_check
    _
  $region7: #{forward.8} parent=0 // pred_check_branch
    %12 = sbr.rel (0) target = $region9
  $region8: #{forward.8} parent=0 // pred_region
    _
  $region9: #{forward.8} parent=0 // pred_fallthru
    _
  %v14 = vld [vmem:[%s0] sm:$0xff]
  %v15 = vld [vmem:[%s0 + $0x8] sm:$0xf]
  %v16 = vld [vmem:[%s0 + $0xc] sm:$0xff]
  %v17 = vld [vmem:[%s0 + $0x14] sm:$0xf]
  %v18 = vld [vmem:[%s1] sm:$0xf]
  %v19 = vld [vmem:[%s1 + $0x4] sm:$0xf]
  %v20 = vld [vmem:[%s1 + $0x8] sm:$0xf]
  %v21 = vld [vmem:[%s1 + $0xc] sm:$0xf]
  %v22 = vld [vmem:[%s1 + $0x10] sm:$0xf]
  %v23 = vld [vmem:[%s1 + $0x14] sm:$0xf]
  %v24 = vld [vmem:[%s1 + $0x18] sm:$0xf]
  %v25 = vld [vmem:[%s1 + $0x1c] sm:$0xf]
  %v26 = vld [vmem:[%s1 + $0x20] sm:$0xf]
  %v27 = vld [vmem:[%s1 + $0x24] sm:$0xf]
  %v28 = vld [vmem:[%s1 + $0x28] sm:$0xf]
  %v29 = vld [vmem:[%s1 + $0x2c] sm:$0xf]
  %v30 = vld [vmem:[%s1 + $0x30] sm:$0xf]
  %v31 = vld [vmem:[%s1 + $0x34] sm:$0xf]
  %v32 = vld [vmem:[%s1 + $0x38] sm:$0xf]
  %v33 = vld [vmem:[%s1 + $0x3c] sm:$0xf]
  %v34 = vld [vmem:[%s1 + $0x40] sm:$0xf]
  %v35 = vld [vmem:[%s1 + $0x44] sm:$0xf]
  %v36 = vld [vmem:[%s1 + $0x48] sm:$0xf]
  %v37 = vld [vmem:[%s1 + $0x4c] sm:$0xf]
  %v38 = vld [vmem:[%s1 + $0x50] sm:$0xf]
  %v39 = vld [vmem:[%s1 + $0x54] sm:$0xf]
  %v40 = vld [vmem:[%s1 + $0x58] sm:$0xf]
  %v41 = vld [vmem:[%s1 + $0x5c] sm:$0xf]
  %v42 = vld [vmem:[%s1 + $0x60] sm:$0xf]
  %v43 = vld [vmem:[%s1 + $0x64] sm:$0xf]
  %v44 = vld [vmem:[%s1 + $0x68] sm:$0xf]
  %v45 = vld [vmem:[%s1 + $0x6c] sm:$0xf]
  %v46 = vld [vmem:[%s1 + $0x70] sm:$0xf]
  %v47 = vld [vmem:[%s1 + $0x74] sm:$0xf]
  %v48 = vld [vmem:[%s1 + $0x78] sm:$0xf]
  %v49 = vld [vmem:[%s1 + $0x7c] sm:$0xf]
  %v50 = vld [vmem:[%s1 + $0x80] sm:$0xf]
  %v51 = vld [vmem:[%s1 + $0x84] sm:$0xf]
  %v52 = vld [vmem:[%s1 + $0x88] sm:$0xf]
  %v53 = vld [vmem:[%s1 + $0x8c] sm:$0xf]
  %v58 = vunpack.c.l.b16 %v14
  %v59 = vunpack.c.h.b16 %v14
  %v60 = vunpack.c.l.b16 %v15
  %v61 = vunpack.c.l.b16 %v16
  %v62 = vunpack.c.h.b16 %v16
  %v63 = vunpack.c.l.b16 %v17
  %v64 = vpack.c.b16 %v61, %v58
  %v65 = vpack.c.b16 %v62, %v59
  %v66 = vpack.c.b16 %v63, %v60
  %v105 = vunpack.c.l.b16 %v18
  %v106 = vunpack.c.l.b16 %v19
  %v107 = vunpack.c.l.b16 %v20
  %v108 = vunpack.c.l.b16 %v21
  %v109 = vunpack.c.l.b16 %v22
  %v110 = vunpack.c.l.b16 %v23
  %v111 = vunpack.c.l.b16 %v24
  %v112 = vunpack.c.l.b16 %v25
  %v113 = vunpack.c.l.b16 %v26
  %v114 = vunpack.c.l.b16 %v27
  %v115 = vunpack.c.l.b16 %v28
  %v116 = vunpack.c.l.b16 %v29
  %v117 = vunpack.c.l.b16 %v30
  %v118 = vunpack.c.l.b16 %v31
  %v119 = vunpack.c.l.b16 %v32
  %v120 = vunpack.c.l.b16 %v33
  %v121 = vunpack.c.l.b16 %v34
  %v122 = vunpack.c.l.b16 %v35
  %v123 = vunpack.c.l.b16 %v36
  %v124 = vunpack.c.l.b16 %v37
  %v125 = vunpack.c.l.b16 %v38
  %v126 = vunpack.c.l.b16 %v39
  %v127 = vunpack.c.l.b16 %v40
  %v128 = vunpack.c.l.b16 %v41
  %v129 = vunpack.c.l.b16 %v42
  %v130 = vunpack.c.l.b16 %v43
  %v131 = vunpack.c.l.b16 %v44
  %v132 = vunpack.c.l.b16 %v45
  %v133 = vunpack.c.l.b16 %v46
  %v134 = vunpack.c.l.b16 %v47
  %v135 = vunpack.c.l.b16 %v48
  %v136 = vunpack.c.l.b16 %v49
  %v137 = vunpack.c.l.b16 %v50
  %v138 = vunpack.c.l.b16 %v51
  %v139 = vunpack.c.l.b16 %v52
  %v140 = vunpack.c.l.b16 %v53
  %v141 = vpack.c.b16 %v106, %v105
  %v142 = vpack.c.b16 %v108, %v107
  %v143 = vpack.c.b16 %v110, %v109
  %v144 = vpack.c.b16 %v112, %v111
  %v145 = vpack.c.b16 %v114, %v113
  %v146 = vpack.c.b16 %v116, %v115
  %v147 = vpack.c.b16 %v118, %v117
  %v148 = vpack.c.b16 %v120, %v119
  %v149 = vpack.c.b16 %v122, %v121
  %v150 = vpack.c.b16 %v124, %v123
  %v151 = vpack.c.b16 %v126, %v125
  %v152 = vpack.c.b16 %v128, %v127
  %v153 = vpack.c.b16 %v130, %v129
  %v154 = vpack.c.b16 %v132, %v131
  %v155 = vpack.c.b16 %v134, %v133
  %v156 = vpack.c.b16 %v136, %v135
  %v157 = vpack.c.b16 %v138, %v137
  %v158 = vpack.c.b16 %v140, %v139
  %vm177 = vcmask 261120
  %v179 = vsel %vm177, %v66, 0
  %181 = vmatprep.subr.bf16.mxu0 0
  %182 = vmatpush1.bf16.msra.mxu0 %v141
  %183 = vmatprep.subr.bf16.mxu0 0
  %184 = vmatpush1.bf16.msra.mxu0 %v142
  %185 = vmatprep.subr.bf16.mxu0 0
  %186 = vmatpush1.bf16.msra.mxu0 %v143
  %187 = vmatprep.subr.bf16.mxu0 0
  %188 = vmatpush1.bf16.msra.mxu0 %v144
  %189 = vmatprep.subr.bf16.mxu0 0
  %190 = vmatpush1.bf16.msra.mxu0 %v145
  %191 = vmatprep.subr.bf16.mxu0 0
  %192 = vmatpush1.bf16.msra.mxu0 %v146
  %193 = vmatprep.subr.bf16.mxu0 0
  %194 = vmatpush1.bf16.msra.mxu0 %v147
  %195 = vmatprep.subr.bf16.mxu0 0
  %196 = vmatpush1.bf16.msra.mxu0 %v148
  %197 = vmatprep.subr.bf16.mxu0 0
  %198 = vmatpush1.bf16.msra.mxu0 %v149
  %199 = vmatprep.subr.bf16.mxu0 0
  %200 = vmatpush1.bf16.msra.mxu0 %v150
  %201 = vmatprep.subr.bf16.mxu0 0
  %202 = vmatpush1.bf16.msra.mxu0 %v151
  %203 = vmatprep.subr.bf16.mxu0 0
  %204 = vmatpush1.bf16.msra.mxu0 %v152
  %205 = vmatprep.subr.bf16.mxu0 0
  %206 = vmatpush1.bf16.msra.mxu0 %v153
  %207 = vmatprep.subr.bf16.mxu0 0
  %208 = vmatpush1.bf16.msra.mxu0 %v154
  %209 = vmatprep.subr.bf16.mxu0 0
  %210 = vmatpush1.bf16.msra.mxu0 %v155
  %211 = vmatprep.subr.bf16.mxu0 0
  %212 = vmatpush1.bf16.msra.mxu0 %v156
  %213 = vmatprep.mubr.bf16.mxu0 %v65
  %214 = vmatmul.mubr.bf16.gmra.mrb[0].mxu0 %v64
  %v215 = vpop.f32.mrb[0].mxu0
  %v216 = vadd.f32 0.0, %v215
  %v217 = vpop.f32.mrb[0].mxu0
  %v218 = vpop.f32.mrb[0].mxu0
  %v219 = vadd.f32 0.0, %v218
  %v220 = vpop.f32.mrb[0].mxu0
  %221 = vdwg.mxu0
  %222 = vmatprep.subr.bf16.mxu0 0
  %223 = vmatpush1.bf16.msra.mxu0 %v157
  %224 = vmatprep.subr.bf16.mxu0 0
  %225 = vmatpush1.bf16.msra.mxu0 %v158
  %226 = vmatprep.subr.bf16.mxu0 0
  %227 = vmatpush1.bf16.msra.mxu0 0
  %228 = vmatprep.subr.bf16.mxu0 0
  %229 = vmatpush1.bf16.msra.mxu0 0
  %230 = vmatprep.subr.bf16.mxu0 0
  %231 = vmatpush1.bf16.msra.mxu0 0
  %232 = vmatprep.subr.bf16.mxu0 0
  %233 = vmatpush1.bf16.msra.mxu0 0
  %234 = vmatprep.subr.bf16.mxu0 0
  %235 = vmatpush1.bf16.msra.mxu0 0
  %236 = vmatprep.subr.bf16.mxu0 0
  %237 = vmatpush1.bf16.msra.mxu0 0
  %238 = vmatprep.subr.bf16.mxu0 0
  %239 = vmatpush1.bf16.msra.mxu0 0
  %240 = vmatprep.subr.bf16.mxu0 0
  %241 = vmatpush1.bf16.msra.mxu0 0
  %242 = vmatprep.subr.bf16.mxu0 0
  %243 = vmatpush1.bf16.msra.mxu0 0
  %244 = vmatprep.subr.bf16.mxu0 0
  %245 = vmatpush1.bf16.msra.mxu0 0
  %246 = vmatprep.subr.bf16.mxu0 0
  %247 = vmatpush1.bf16.msra.mxu0 0
  %248 = vmatprep.subr.bf16.mxu0 0
  %249 = vmatpush1.bf16.msra.mxu0 0
  %250 = vmatprep.subr.bf16.mxu0 0
  %251 = vmatpush1.bf16.msra.mxu0 0
  %252 = vmatprep.subr.bf16.mxu0 0
  %253 = vmatpush1.bf16.msra.mxu0 0
  %254 = vmatprep.mubr.bf16.mxu0 0
  %255 = vmatmul.mubr.bf16.gmra.mrb[0].mxu0 %v179
  %v256 = vpop.f32.mrb[0].mxu0
  %v257 = vadd.f32 %v216, %v256
  %v258 = vpop.f32.mrb[0].mxu0
  %v259 = vpop.f32.mrb[0].mxu0
  %v260 = vadd.f32 %v219, %v259
  %v261 = vpop.f32.mrb[0].mxu0
  %262 = vdwg.mxu0
  %v263 = vpack.c.bf16 %v260, %v257
  %v265 = vunpack.c.l.b16 %v263
  %v266 = vunpack.c.h.b16 %v263
  %v267 = vpack.c.b16 %v265, %v265
  %v268 = vpack.c.b16 %v266, %v266
  %271 = vst [vmem:[%s2] sm:$0xf] %v267
  %272 = vst [vmem:[%s2 + $0x4] sm:$0xf] %v268
  %v273 = vadd.f32 %v257, %v260
  %v274 = vrot.slane %v273, 4
  %v275 = vadd.f32 %v273, %v274
  %v276 = vrot.slane %v275, 2
  %v277 = vadd.f32 %v275, %v276
  %v278 = vrot.slane %v277, 1
  %v279 = vadd.f32 %v277, %v278
  %280 = vst [vmem:[%s3] sm:$0x1] %v279
  %v281 = vmul.f32 %v257, %v257
  %v282 = vmul.f32 %v260, %v260
  %v283 = vadd.f32 %v281, %v282
  %v284 = vrot.slane %v283, 4
  %v285 = vadd.f32 %v283, %v284
  %v286 = vrot.slane %v285, 2
  %v287 = vadd.f32 %v285, %v286
  %v288 = vrot.slane %v287, 1
  %v289 = vadd.f32 %v287, %v288
  %290 = vst [vmem:[%s3 + $0x1] sm:$0x1] %v289
  // Predicated region
  $region10: #{forward.8} parent=0 // pred_check
    _
  $region11: #{forward.8} parent=0 // pred_check_branch
    %292 = sbr.rel (0) target = $region13
  $region12: #{forward.8} parent=0 // pred_region
    _
  $region13: #{forward.8} parent=0 // pred_fallthru
    _
  // Predicated region
  $region14: #{forward.8} parent=0 // pred_check
    _
  $region15: #{forward.8} parent=0 // pred_check_branch
    %294 = sbr.rel (0) target = $region17
  $region16: #{forward.8} parent=0 // pred_region
    _
  $region17: #{forward.8} parent=0 // pred_fallthru
    _
  // Predicated region
  $region18: #{forward.8} parent=0 // pred_check
    _
  $region19: #{forward.8} parent=0 // pred_check_branch
    %296 = sbr.rel (0) target = $region21
  $region20: #{forward.8} parent=0 // pred_region
    _
  $region21: #{forward.8} parent=0 // pred_fallthru
    _
  // Predicated region
  $region22: #{forward.8} parent=0 // pred_check
    _
  $region23: #{forward.8} parent=0 // pred_check_branch
    %298 = sbr.rel (0) target = $region25
  $region24: #{forward.8} parent=0 // pred_region
    _
  $region25: #{forward.8} parent=0 // pred_fallthru
    _

// kernel: forward.11
$region0: #{forward.11}
  #allocation0 [shape = 'u32[]', space=smem, size = 0x4, offset = 0x4, fixed_abs, tag = 'smem constant byte address 0x4 - core index']
  #allocation1 [shape = 'u32[144,128]{1,0:T(1,128)}', space=vmem, size = 0x12000, scoped, tag = 'internal scratch']
  %s0 = inlined_call_operand.vmem [shape: bf16[16,128], index: 0, kind: input, shape index: {}]
  %s1 = inlined_call_operand.vmem [shape: f32[1,128], index: 1, kind: input, shape index: {}]
  %s2 = inlined_call_operand.vmem [shape: f32[1,128], index: 2, kind: input, shape index: {}]
  %s3 = inlined_call_operand.vmem [shape: f32[16,128], index: 3, kind: output, shape index: {}]
  %s4 = sld [smem:[#allocation0]]
  $region22: #{forward.11} parent=0
    _
  %s6 = ssub.s32 1, %s4
  %s7 = scalar_select 0, %s6, %s4
  // Predicated region
  $region2: #{forward.11} parent=0 // pred_check
    _
  $region3: #{forward.11} parent=0 // pred_check_branch
    %9 = sbr.rel (0) target = $region5
  $region4: #{forward.11} parent=0 // pred_region
    _
  $region5: #{forward.11} parent=0 // pred_fallthru
    _
  // Predicated region
  $region6: #{forward.11} parent=0 // pred_check
    _
  $region7: #{forward.11} parent=0 // pred_check_branch
    %11 = sbr.rel (0) target = $region9
  $region8: #{forward.11} parent=0 // pred_region
    _
  $region9: #{forward.11} parent=0 // pred_fallthru
    _
  // Predicated region
  $region10: #{forward.11} parent=0 // pred_check
    _
  $region11: #{forward.11} parent=0 // pred_check_branch
    %13 = sbr.rel (0) target = $region13
  $region12: #{forward.11} parent=0 // pred_region
    _
  $region13: #{forward.11} parent=0 // pred_fallthru
    _
  %v14 = vld [vmem:[%s0] sm:$0xf]
  %v15 = vld [vmem:[%s0 + $0x4] sm:$0xf]
  %v16 = vunpack.c.l.bf16 %v14
  %v17 = vunpack.c.l.bf16 %v15
  %v18 = vld [vmem:[%s1] sm:$0x1]
  %v20 = vlaneseq
  %v21 = vshrl.u32 %v20, 7
  %v22 = vsub.s32 0, %v21
  %v23 = vrot.slane %v18, %v22
  %v25 = vmul.f32 %v16, %v23
  %v26 = vmul.f32 %v17, %v23
  %v27 = vld [vmem:[%s2] sm:$0x1]
  %v29 = vlaneseq
  %v30 = vshrl.u32 %v29, 7
  %v31 = vsub.s32 0, %v30
  %v32 = vrot.slane %v27, %v31
  %v34 = vadd.f32 %v25, %v32
  %v35 = vadd.f32 %v26, %v32
  %v36 = vmax.f32 %v34, 0.0
  %v37 = vmax.f32 %v35, 0.0
  %38 = vst [vmem:[%s3] sm:$0xff] %v36
  %39 = vst [vmem:[%s3 + $0x8] sm:$0xff] %v37
  // Predicated region
  $region14: #{forward.11} parent=0 // pred_check
    _
  $region15: #{forward.11} parent=0 // pred_check_branch
    %41 = sbr.rel (0) target = $region17
  $region16: #{forward.11} parent=0 // pred_region
    _
  $region17: #{forward.11} parent=0 // pred_fallthru
    _
  // Predicated region
  $region18: #{forward.11} parent=0 // pred_check
    _
  $region19: #{forward.11} parent=0 // pred_check_branch
    %43 = sbr.rel (0) target = $region21
  $region20: #{forward.11} parent=0 // pred_region
    _
  $region21: #{forward.11} parent=0 // pred_fallthru
    _

// kernel: forward.10
$region0: #{forward.10}
  #allocation0 [shape = 'u32[]', space=smem, size = 0x4, offset = 0x4, fixed_abs, tag = 'smem constant byte address 0x4 - core index']
  #allocation1 [shape = 'u32[144,128]{1,0:T(1,128)}', space=vmem, size = 0x12000, scoped, tag = 'internal scratch']
  %s0 = inlined_call_operand.vmem [shape: bf16[2,1,10,160], index: 0, kind: input, shape index: {}]
  %s1 = inlined_call_operand.vmem [shape: f32[9,128], index: 1, kind: input, shape index: {}]
  %s2 = inlined_call_operand.vmem [shape: bf16[2,8,128], index: 2, kind: output, shape index: {0}]
  %s3 = inlined_call_operand.vmem [shape: f32[2,2,128], index: 3, kind: output, shape index: {1}]
  %4 = xla_tuple %s2, %s3
  %s5 = sld [smem:[#allocation0]]
  $region49: #{forward.10} parent=0
    _
  %s7 = ssub.s32 1, %s5
  %s8 = scalar_select 0, %s7, %s5
  loop: start=0, step=1, limit=4
  $region2: #{forward.10} parent=0 // loop_pre_header
    _
  $region3: #{forward.10} parent=0 // loop_header
    %s10 = sphi 0, %s14
    %p11 = scmp.ge.s32.totalorder %s10, 4
    %s20 = sphi 0, %s22
    %s23 = sphi 0, %s20
    %s24 = sphi 0, %s23
    %s40 = sphi 0, %s24
    %s44 = sphi 0, %s44
    %s46 = sphi 0, %s44
    %s47 = sphi 0, %s46
    %s61 = sphi 0, %s47
    %s67 = sphi 0, %s69
    %s70 = sphi 0, %s67
    %s71 = sphi 0, %s70
    %s87 = sphi 0, %s71
    %s93 = sphi 0, %s95
    %s96 = sphi 0, %s93
    %s97 = sphi 0, %s96
    %s113 = sphi 0, %s97
  $region4: #{forward.10} parent=0 // loop_header_branch
    %13 = sbr.rel (%p11) target = $region8
  $region5: #{forward.10} parent=0 // loop_body
    %s15 = ssub.s32 %s10, 1
    %s16 = ssub.s32 %s10, 2
    %s17 = sadd.s32 %s10, 1
    %s18 = ssub.s32 %s10, %s17
    %p19 = scmp.eq.s32.totalorder %s18, 0
    %s21 = sadd.s32 %s20, 1
    %s22 = scalar_select %p19, %s20, %s21
    %p25 = pneg %p19
    %p26 = scmp.eq.s32.totalorder %s10, 1
    %p27 = por %p25, %p26
    %p28 = scmp.ne.s32.totalorder %s20, %s23
    %p29 = scmp.eq.s32.totalorder %s10, 0
    %p30 = por %p28, %p29
    %p31 = scmp.ne.s32.totalorder %s20, %s23
    %p32 = scmp.eq.s32.totalorder %s15, 1
    %p33 = por %p31, %p32
    %p34 = scmp.ne.s32.totalorder %s23, %s24
    %p35 = scmp.eq.s32.totalorder %s15, 0
    %p36 = por %p34, %p35
    %p37 = scmp.ne.s32.totalorder %s23, %s24
    %p38 = scmp.eq.s32.totalorder %s16, 1
    %p39 = por %p37, %p38
    %p41 = scmp.ne.s32.totalorder %s24, %s40
    %p42 = scmp.eq.s32.totalorder %s16, 0
    %p43 = por %p41, %p42
    %s45 = sadd.s32 %s44, 1
    %p48 = scmp.eq.s32.totalorder %s10, 1
    %p49 = scmp.ne.s32.totalorder %s44, %s46
    %p50 = scmp.eq.s32.totalorder %s10, 0
    %p51 = por %p49, %p50
    %p52 = scmp.ne.s32.totalorder %s44, %s46
    %p53 = scmp.eq.s32.totalorder %s15, 1
    %p54 = por %p52, %p53
    %p55 = scmp.ne.s32.totalorder %s46, %s47
    %p56 = scmp.eq.s32.totalorder %s15, 0
    %p57 = por %p55, %p56
    %p58 = scmp.ne.s32.totalorder %s46, %s47
    %p59 = scmp.eq.s32.totalorder %s16, 1
    %p60 = por %p58, %p59
    %p62 = scmp.ne.s32.totalorder %s47, %s61
    %p63 = scmp.eq.s32.totalorder %s16, 0
    %p64 = por %p62, %p63
    %s65 = ssub.s32 %s10, %s17
    %p66 = scmp.eq.s32.totalorder %s65, 0
    %s68 = sadd.s32 %s67, 1
    %s69 = scalar_select %p66, %s67, %s68
    %p72 = pneg %p66
    %p73 = scmp.eq.s32.totalorder %s10, 1
    %p74 = por %p72, %p73
    %p75 = scmp.ne.s32.totalorder %s67, %s70
    %p76 = scmp.eq.s32.totalorder %s10, 0
    %p77 = por %p75, %p76
    %p78 = scmp.ne.s32.totalorder %s67, %s70
    %p79 = scmp.eq.s32.totalorder %s15, 1
    %p80 = por %p78, %p79
    %p81 = scmp.ne.s32.totalorder %s70, %s71
    %p82 = scmp.eq.s32.totalorder %s15, 0
    %p83 = por %p81, %p82
    %p84 = scmp.ne.s32.totalorder %s70, %s71
    %p85 = scmp.eq.s32.totalorder %s16, 1
    %p86 = por %p84, %p85
    %p88 = scmp.ne.s32.totalorder %s71, %s87
    %p89 = scmp.eq.s32.totalorder %s16, 0
    %p90 = por %p88, %p89
    %s91 = ssub.s32 %s10, %s17
    %p92 = scmp.eq.s32.totalorder %s91, 0
    %s94 = sadd.s32 %s93, 1
    %s95 = scalar_select %p92, %s93, %s94
    %p98 = pneg %p92
    %p99 = scmp.eq.s32.totalorder %s10, 1
    %p100 = por %p98, %p99
    %p101 = scmp.ne.s32.totalorder %s93, %s96
    %p102 = scmp.eq.s32.totalorder %s10, 0
    %p103 = por %p101, %p102
    %p104 = scmp.ne.s32.totalorder %s93, %s96
    %p105 = scmp.eq.s32.totalorder %s15, 1
    %p106 = por %p104, %p105
    %p107 = scmp.ne.s32.totalorder %s96, %s97
    %p108 = scmp.eq.s32.totalorder %s15, 0
    %p109 = por %p107, %p108
    %p110 = scmp.ne.s32.totalorder %s96, %s97
    %p111 = scmp.eq.s32.totalorder %s16, 1
    %p112 = por %p110, %p111
    %p114 = scmp.ne.s32.totalorder %s97, %s113
    %p115 = scmp.eq.s32.totalorder %s16, 0
    %p116 = por %p114, %p115
    %p117 = scmp.le.s32.totalorder 1, %s10
    %p118 = scmp.lt.s32.totalorder %s10, 3
    %p119 = pnand %p117, %p118
    %p120 = pneg %p119
    // Predicated region
    $region9: #{forward.10} parent=5 // pred_check
      _
    $region10: #{forward.10} parent=5 // pred_check_branch
      %122 = sbr.rel (%p119) target = $region12
    $region11: #{forward.10} parent=5 // pred_region
      %s123 = ssub.s32 %s10, 1
      // Predicated region
      $region13: #{forward.10} parent=11 // pred_check
        %p124 = pneg %p57
      $region14: #{forward.10} parent=11 // pred_check_branch
        %126 = sbr.rel (%p124) target = $region16
      $region15: #{forward.10} parent=11 // pred_region
        _
      $region16: #{forward.10} parent=11 // pred_fallthru
        _
    $region12: #{forward.10} parent=5 // pred_fallthru
      _
    %p127 = scmp.lt.s32.totalorder %s10, 2
    // Predicated region
    $region17: #{forward.10} parent=5 // pred_check
      %p128 = pneg %p127
    $region18: #{forward.10} parent=5 // pred_check_branch
      %130 = sbr.rel (%p128) target = $region20
    $region19: #{forward.10} parent=5 // pred_region
      // Predicated region
      $region21: #{forward.10} parent=19 // pred_check
        %p131 = pneg %p30
      $region22: #{forward.10} parent=19 // pred_check_branch
        %133 = sbr.rel (%p131) target = $region24
      $region23: #{forward.10} parent=19 // pred_region
        %p134 = scmp.lt.s32.totalorder %s10, 1
        %s135 = scalar_select %p134, %s10, 1
        %s136 = smul.addr %s135, 4
        %s137 = smul.addr %s136, 4
        %s138 = scalar_lea.vmem %s0, %s137
      $region24: #{forward.10} parent=19 // pred_fallthru
        _
    $region20: #{forward.10} parent=5 // pred_fallthru
      _
    %p139 = scmp.le.s32.totalorder 1, %s10
    %p140 = scmp.lt.s32.totalorder %s10, 3
    %p141 = pnand %p139, %p140
    %p142 = pneg %p141
    // Predicated region
    $region25: #{forward.10} parent=5 // pred_check
      _
    $region26: #{forward.10} parent=5 // pred_check_branch
      %144 = sbr.rel (%p141) target = $region28
    $region27: #{forward.10} parent=5 // pred_region
      %s145 = ssub.s32 %s10, 1
      %p146 = scmp.lt.s32.totalorder %s15, 1
      %s147 = scalar_select %p146, %s15, 1
      %s148 = smul.addr %s147, 4
      %s149 = smul.addr %s148, 4
      %s150 = scalar_lea.vmem %s0, %s149
      %p151 = pneg %p36
      %p152 = pneg %p33
      %p153 = pneg %p57
      %p154 = pneg %p54
      %p155 = pneg %p83
      %p156 = pneg %p80
      %p157 = scmp.lt.s32.totalorder %s15, 1
      %s158 = scalar_select %p157, %s15, 1
      %s159 = smul.addr %s158, 4
      %s160 = scalar_lea.vmem %s2, %s159
      %p161 = pneg %p109
      %p162 = pneg %p106
      %p163 = scmp.lt.s32.totalorder %s15, 1
      %s164 = scalar_select %p163, %s15, 1
      %s165 = smul.addr %s164, 2
      %s166 = scalar_lea.vmem %s3, %s165
      %p167 = scmp.lt.s32.totalorder %s15, 1
      %s168 = scalar_select %p167, %s15, 1
      %s169 = smul.addr %s168, 4
      %s170 = smul.addr %s169, 4
      %s171 = scalar_lea.vmem %s0, %s170
      %p172 = scmp.lt.s32.totalorder %s15, 1
      %s173 = scalar_select %p172, %s15, 1
      %s174 = smul.addr %s173, 4
      %s175 = scalar_lea.vmem %s2, %s174
      %p176 = scmp.lt.s32.totalorder %s15, 1
      %s177 = scalar_select %p176, %s15, 1
      %s178 = smul.addr %s177, 2
      %s179 = scalar_lea.vmem %s3, %s178
      %v180 = vld [vmem:[%s171] sm:$0xff]
      %v181 = vld [vmem:[%s171 + $0x8] sm:$0x11]
      %v182 = vunpack.c.l.bf16 %v180
      %v183 = vunpack.c.h.bf16 %v180
      %v184 = vunpack.c.l.bf16 %v181
      %v185 = vunpack.c.h.bf16 %v181
      %v186 = vld [vmem:[%s1] sm:$0x1]
      %v187 = vlaneseq
      %v188 = vshrl.u32 %v187, 7
      %v189 = vsub.s32 0, %v188
      %v190 = vrot.slane %v186, %v189
      %v191 = vmul.f32 %v182, %v190
      %v192 = vadd.f32 %v191, 0.0
      %v193 = vld [vmem:[%s1 + $0x1] sm:$0x1]
      %v194 = vlaneseq
      %v195 = vshrl.u32 %v194, 7
      %v196 = vsub.s32 0, %v195
      %v197 = vrot.slane %v193, %v196
      %199 = vrot.lane.b32.xlu0 %v197, 16
      %v200 = vpop.permute.xlu0 %199
      %v202 = vmul.f32 %v182, %v200
      %v203 = vmul.f32 %v183, %v200
      %206 = vrot.lane.b32.xlu0 %v202, 112
      %v207 = vpop.permute.xlu0 %206
      %208 = vrot.lane.b32.xlu0 %v203, 112
      %v209 = vpop.permute.xlu0 %208
      %vm210 = vcmask 916480
      %v211 = vsel %vm210, %v207, %v209
      %v213 = vadd.f32 %v192, %v211
      %v214 = vld [vmem:[%s1 + $0x2] sm:$0x1]
      %v215 = vlaneseq
      %v216 = vshrl.u32 %v215, 7
      %v217 = vsub.s32 0, %v216
      %v218 = vrot.slane %v214, %v217
      %220 = vrot.lane.b32.xlu0 %v218, 32
      %v221 = vpop.permute.xlu0 %220
      %v223 = vmul.f32 %v182, %v221
      %v224 = vmul.f32 %v183, %v221
      %227 = vrot.lane.b32.xlu0 %v223, 96
      %v228 = vpop.permute.xlu0 %227
      %229 = vrot.lane.b32.xlu0 %v224, 96
      %v230 = vpop.permute.xlu0 %229
      %vm231 = vcmask 785408
      %v232 = vsel %vm231, %v228, %v230
      %v234 = vadd.f32 %v213, %v232
      %v235 = vld [vmem:[%s1 + $0x3] sm:$0x1]
      %v236 = vlaneseq
      %v237 = vshrl.u32 %v236, 7
      %v238 = vsub.s32 0, %v237
      %v239 = vrot.slane %v235, %v238
      %v240 = vmul.f32 %v182, %v239
      %v241 = vmul.f32 %v184, %v239
      %vm244 = vcmask 1046528
      %v245 = vrot.slane %v240, 1
      %v246 = vrot.slane %v241, 1
      %v247 = vsel %vm244, %v245, %v246
      %v249 = vadd.f32 %v234, %v247
      %v250 = vld [vmem:[%s1 + $0x4] sm:$0x1]
      %v251 = vlaneseq
      %v252 = vshrl.u32 %v251, 7
      %v253 = vsub.s32 0, %v252
      %v254 = vrot.slane %v250, %v253
      %256 = vrot.lane.b32.xlu0 %v254, 16
      %v257 = vpop.permute.xlu0 %256
      %v259 = vmul.f32 %v182, %v257
      %v260 = vmul.f32 %v183, %v257
      %v261 = vmul.f32 %v184, %v257
      %v262 = vmul.f32 %v185, %v257
      %v267 = vrot.slane %v259, 1
      %v268 = vrot.slane %v261, 1
      %v269 = vsel %vm244, %v267, %v268
      %v270 = vrot.slane %v260, 1
      %v271 = vrot.slane %v262, 1
      %v272 = vsel %vm244, %v270, %v271
      %273 = vrot.lane.b32.xlu0 %v269, 112
      %v274 = vpop.permute.xlu0 %273
      %275 = vrot.lane.b32.xlu0 %v272, 112
      %v276 = vpop.permute.xlu0 %275
      %v277 = vsel %vm210, %v274, %v276
      %v279 = vadd.f32 %v249, %v277
      %v280 = vld [vmem:[%s1 + $0x5] sm:$0x1]
      %v281 = vlaneseq
      %v282 = vshrl.u32 %v281, 7
      %v283 = vsub.s32 0, %v282
      %v284 = vrot.slane %v280, %v283
      %286 = vrot.lane.b32.xlu0 %v284, 32
      %v287 = vpop.permute.xlu0 %286
      %v289 = vmul.f32 %v182, %v287
      %v290 = vmul.f32 %v183, %v287
      %v291 = vmul.f32 %v184, %v287
      %v292 = vmul.f32 %v185, %v287
      %v297 = vrot.slane %v289, 1
      %v298 = vrot.slane %v291, 1
      %v299 = vsel %vm244, %v297, %v298
      %v300 = vrot.slane %v290, 1
      %v301 = vrot.slane %v292, 1
      %v302 = vsel %vm244, %v300, %v301
      %303 = vrot.lane.b32.xlu0 %v299, 96
      %v304 = vpop.permute.xlu0 %303
      %305 = vrot.lane.b32.xlu0 %v302, 96
      %v306 = vpop.permute.xlu0 %305
      %v307 = vsel %vm231, %v304, %v306
      %v309 = vadd.f32 %v279, %v307
      %v310 = vld [vmem:[%s1 + $0x6] sm:$0x1]
      %v311 = vlaneseq
      %v312 = vshrl.u32 %v311, 7
      %v313 = vsub.s32 0, %v312
      %v314 = vrot.slane %v310, %v313
      %v315 = vmul.f32 %v182, %v314
      %v316 = vmul.f32 %v184, %v314
      %vm319 = vcmask 1045504
      %v320 = vrot.slane %v315, 2
      %v321 = vrot.slane %v316, 2
      %v322 = vsel %vm319, %v320, %v321
      %v324 = vadd.f32 %v309, %v322
      %v325 = vld [vmem:[%s1 + $0x7] sm:$0x1]
      %v326 = vlaneseq
      %v327 = vshrl.u32 %v326, 7
      %v328 = vsub.s32 0, %v327
      %v329 = vrot.slane %v325, %v328
      %331 = vrot.lane.b32.xlu0 %v329, 16
      %v332 = vpop.permute.xlu0 %331
      %v334 = vmul.f32 %v182, %v332
      %v335 = vmul.f32 %v183, %v332
      %v336 = vmul.f32 %v184, %v332
      %v337 = vmul.f32 %v185, %v332
      %v342 = vrot.slane %v334, 2
      %v343 = vrot.slane %v336, 2
      %v344 = vsel %vm319, %v342, %v343
      %v345 = vrot.slane %v335, 2
      %v346 = vrot.slane %v337, 2
      %v347 = vsel %vm319, %v345, %v346
      %348 = vrot.lane.b32.xlu0 %v344, 112
      %v349 = vpop.permute.xlu0 %348
      %350 = vrot.lane.b32.xlu0 %v347, 112
      %v351 = vpop.permute.xlu0 %350
      %v352 = vsel %vm210, %v349, %v351
      %v354 = vadd.f32 %v324, %v352
      %v355 = vld [vmem:[%s1 + $0x8] sm:$0x1]
      %v356 = vlaneseq
      %v357 = vshrl.u32 %v356, 7
      %v358 = vsub.s32 0, %v357
      %v359 = vrot.slane %v355, %v358
      %361 = vrot.lane.b32.xlu0 %v359, 32
      %v362 = vpop.permute.xlu0 %361
      %v364 = vmul.f32 %v182, %v362
      %v365 = vmul.f32 %v183, %v362
      %v366 = vmul.f32 %v184, %v362
      %v367 = vmul.f32 %v185, %v362
      %v372 = vrot.slane %v364, 2
      %v373 = vrot.slane %v366, 2
      %v374 = vsel %vm319, %v372, %v373
      %v375 = vrot.slane %v365, 2
      %v376 = vrot.slane %v367, 2
      %v377 = vsel %vm319, %v375, %v376
      %378 = vrot.lane.b32.xlu0 %v374, 96
      %v379 = vpop.permute.xlu0 %378
      %380 = vrot.lane.b32.xlu0 %v377, 96
      %v381 = vpop.permute.xlu0 %380
      %v382 = vsel %vm231, %v379, %v381
      %v384 = vadd.f32 %v354, %v382
      %v385 = vpack.c.bf16 %v384, %v384
      %386 = vst [vmem:[%s175] sm:$0xf] %v385
      %v387 = vrot.slane %v384, 4
      %v388 = vadd.f32 %v384, %v387
      %v389 = vrot.slane %v388, 2
      %v390 = vadd.f32 %v388, %v389
      %v391 = vrot.slane %v390, 1
      %v392 = vadd.f32 %v390, %v391
      %393 = vst [vmem:[%s179] sm:$0x1] %v392
      %v394 = vmul.f32 %v384, %v384
      %v395 = vrot.slane %v394, 4
      %v396 = vadd.f32 %v394, %v395
      %v397 = vrot.slane %v396, 2
      %v398 = vadd.f32 %v396, %v397
      %v399 = vrot.slane %v398, 1
      %v400 = vadd.f32 %v398, %v399
      %401 = vst [vmem:[%s179 + $0x1] sm:$0x1] %v400
      %p402 = scmp.lt.s32.totalorder %s15, 1
      %s403 = scalar_select %p402, %s15, 1
      %s404 = smul.addr %s403, 4
      %s405 = scalar_lea.vmem %s2, %s404
      %p406 = scmp.lt.s32.totalorder %s15, 1
      %s407 = scalar_select %p406, %s15, 1
      %s408 = smul.addr %s407, 2
      %s409 = scalar_lea.vmem %s3, %s408
      // Predicated region
      $region29: #{forward.10} parent=27 // pred_check
        %p410 = pneg %p80
      $region30: #{forward.10} parent=27 // pred_check_branch
        %412 = sbr.rel (%p410) target = $region32
      $region31: #{forward.10} parent=27 // pred_region
        _
      $region32: #{forward.10} parent=27 // pred_fallthru
        _
      // Predicated region
      $region33: #{forward.10} parent=27 // pred_check
        %p413 = pneg %p106
      $region34: #{forward.10} parent=27 // pred_check_branch
        %415 = sbr.rel (%p413) target = $region36
      $region35: #{forward.10} parent=27 // pred_region
        _
      $region36: #{forward.10} parent=27 // pred_fallthru
        _
    $region28: #{forward.10} parent=5 // pred_fallthru
      _
    %p416 = scmp.le.s32.totalorder 2, %s10
    // Predicated region
    $region37: #{forward.10} parent=5 // pred_check
      %p417 = pneg %p416
    $region38: #{forward.10} parent=5 // pred_check_branch
      %419 = sbr.rel (%p417) target = $region40
    $region39: #{forward.10} parent=5 // pred_region
      %s420 = ssub.s32 %s10, 2
      // Predicated region
      $region41: #{forward.10} parent=39 // pred_check
        %p421 = pneg %p86
      $region42: #{forward.10} parent=39 // pred_check_branch
        %423 = sbr.rel (%p421) target = $region44
      $region43: #{forward.10} parent=39 // pred_region
        %p424 = scmp.lt.s32.totalorder %s16, 1
        %s425 = scalar_select %p424, %s16, 1
        %s426 = smul.addr %s425, 4
        %s427 = scalar_lea.vmem %s2, %s426
      $region44: #{forward.10} parent=39 // pred_fallthru
        _
      // Predicated region
      $region45: #{forward.10} parent=39 // pred_check
        %p428 = pneg %p112
      $region46: #{forward.10} parent=39 // pred_check_branch
        %430 = sbr.rel (%p428) target = $region48
      $region47: #{forward.10} parent=39 // pred_region
        %p431 = scmp.lt.s32.totalorder %s16, 1
        %s432 = scalar_select %p431, %s16, 1
        %s433 = smul.addr %s432, 2
        %s434 = scalar_lea.vmem %s3, %s433
      $region48: #{forward.10} parent=39 // pred_fallthru
        _
    $region40: #{forward.10} parent=5 // pred_fallthru
      _
  $region6: #{forward.10} parent=0 // loop_footer
    %s14 = sadd.s32 1, %s10
  $region7: #{forward.10} parent=0 // loop_footer_branch
    %9 = sbr.rel target = $region3
  $region8: #{forward.10} parent=0 // loop_exit
    _

// kernel: tile.79
$region0: #{tile.79}
  #allocation0 [shape = 's32[1]{0}', space=sflag, size = 0x4, scoped, tag = 'scoped memory for tile.79']
  %s0 = inlined_call_operand.vmem [shape: f32[16], index: 0, kind: input, shape index: {}]
  %s1 = inlined_call_operand.vmem [shape: f32[4,16], index: 1, kind: output, shape index: {}]
  // Predicated region
  $region2: #{tile.79} parent=0 // pred_check
    _
  $region3: #{tile.79} parent=0 // pred_check_branch
    %3 = sbr.rel (0) target = $region5
  $region4: #{tile.79} parent=0 // pred_region
    _
  $region5: #{tile.79} parent=0 // pred_fallthru
    _
  %v4 = vld [vmem:[%s0] ss:$0 sm:$0xff]
  %5 = vst [vmem:[%s1] sm:$0xf] %v4

// kernel: tile.80
$region0: #{tile.80}
  %s0 = inlined_call_operand.vmem [shape: f32[4,16], index: 0, kind: input, shape index: {}]
  %s1 = inlined_call_operand.vmem [shape: f32[1,64], index: 1, kind: output, shape index: {}]
  $region1: #{tile.80} parent=0
    #allocation0 [shape = 'u8[4096]{0}', space=vmem, size = 0x1000, scoped, tag = 'scoped mem for output reshape']
    #allocation1 [shape = 'u8[4096]{0}', space=vmem, size = 0x1000, scoped, tag = 'scoped mem for input reshape']
    %s3 = sshllo.u32 0, 4
    %v4 = vld [vmem:[%s0] sm:%s3]
    %5 = vst [vmem:[#allocation1] sm:%s3] %v4
    %v6 = vld [vmem:[#allocation1] sm:$0x1]
    %vm7 = vcmask 130048
    %8 = vst.msk [vmem:[#allocation0] sm:$0x1] %vm7, %v6
    %s9 = scalar_lea.vmem [#allocation1], 3
    %v10 = vld [vmem:[%s9] sm:$0x1]
    %11 = vrot.lane.b32.xlu0 %v10, 48
    %v12 = vpop.permute.xlu0 %11
    %vm13 = vcmask 523648
    %14 = vst.msk [vmem:[#allocation0] sm:$0x1] %vm13, %v12
    %s15 = scalar_lea.vmem [#allocation1], 2
    %v16 = vld [vmem:[%s15] sm:$0x1]
    %17 = vrot.lane.b32.xlu0 %v16, 32
    %v18 = vpop.permute.xlu0 %17
    %vm19 = vcmask 392448
    %20 = vst.msk [vmem:[#allocation0] sm:$0x1] %vm19, %v18
    %s21 = scalar_lea.vmem [#allocation1], 1
    %v22 = vld [vmem:[%s21] sm:$0x1]
    %23 = vrot.lane.b32.xlu0 %v22, 16
    %v24 = vpop.permute.xlu0 %23
    %vm25 = vcmask 261248
    %26 = vst.msk [vmem:[#allocation0] sm:$0x1] %vm25, %v24
    %s28 = sshllo.u32 0, 1
    %v30 = vld [vmem:[#allocation0] sm:%s28]
    %s31 = sshllo.u32 0, 1
    %32 = vst [vmem:[%s1] sm:%s31] %v30

// kernel: tile.89
$region0: #{tile.89}
  #allocation0 [shape = 's32[1]{0}', space=sflag, size = 0x4, scoped, tag = 'scoped memory for tile.89']
  %s0 = inlined_call_operand.vmem [shape: f32[32], index: 0, kind: input, shape index: {}]
  %s1 = inlined_call_operand.vmem [shape: f32[4,32], index: 1, kind: output, shape index: {}]
  // Predicated region
  $region2: #{tile.89} parent=0 // pred_check
    _
  $region3: #{tile.89} parent=0 // pred_check_branch
    %3 = sbr.rel (0) target = $region5
  $region4: #{tile.89} parent=0 // pred_region
    _
  $region5: #{tile.89} parent=0 // pred_fallthru
    _
  %v4 = vld [vmem:[%s0] ss:$0 sm:$0xff]
  %5 = vst [vmem:[%s1] sm:$0xf] %v4

// kernel: tile.90
$region0: #{tile.90}
  %s0 = inlined_call_operand.vmem [shape: f32[4,32], index: 0, kind: input, shape index: {}]
  %s1 = inlined_call_operand.vmem [shape: f32[1,128], index: 1, kind: output, shape index: {}]
  $region1: #{tile.90} parent=0
    #allocation0 [shape = 'u8[4096]{0}', space=vmem, size = 0x1000, scoped, tag = 'scoped mem for output reshape']
    #allocation1 [shape = 'u8[4096]{0}', space=vmem, size = 0x1000, scoped, tag = 'scoped mem for input reshape']
    %s3 = sshllo.u32 0, 4
    %v4 = vld [vmem:[%s0] sm:%s3]
    %5 = vst [vmem:[#allocation1] sm:%s3] %v4
    %v6 = vld [vmem:[#allocation1] sm:$0x1]
    %vm7 = vcmask 261120
    %8 = vst.msk [vmem:[#allocation0] sm:$0x1] %vm7, %v6
    %s9 = scalar_lea.vmem [#allocation1], 3
    %v10 = vld [vmem:[%s9] sm:$0x1]
    %11 = vrot.lane.b32.xlu0 %v10, 96
    %v12 = vpop.permute.xlu0 %11
    %vm13 = vcmask 1048320
    %14 = vst.msk [vmem:[#allocation0] sm:$0x1] %vm13, %v12
    %s15 = scalar_lea.vmem [#allocation1], 2
    %v16 = vld [vmem:[%s15] sm:$0x1]
    %17 = vrot.lane.b32.xlu0 %v16, 64
    %v18 = vpop.permute.xlu0 %17
    %vm19 = vcmask 785920
    %20 = vst.msk [vmem:[#allocation0] sm:$0x1] %vm19, %v18
    %s21 = scalar_lea.vmem [#allocation1], 1
    %v22 = vld [vmem:[%s21] sm:$0x1]
    %23 = vrot.lane.b32.xlu0 %v22, 32
    %v24 = vpop.permute.xlu0 %23
    %vm25 = vcmask 523520
    %26 = vst.msk [vmem:[#allocation0] sm:$0x1] %vm25, %v24
    %s28 = sshllo.u32 0, 1
    %v30 = vld [vmem:[#allocation0] sm:%s28]
    %s31 = sshllo.u32 0, 1
    %32 = vst [vmem:[%s1] sm:%s31] %v30

// kernel: forward.12
$region0: #{forward.12}
  #allocation0 [shape = 'u32[]', space=smem, size = 0x4, offset = 0x4, fixed_abs, tag = 'smem constant byte address 0x4 - core index']
  #allocation1 [shape = 'u32[144,128]{1,0:T(1,128)}', space=vmem, size = 0x12000, scoped, tag = 'internal scratch']
  %s0 = inlined_call_operand.vmem [shape: bf16[2,4,6,96], index: 0, kind: input, shape index: {}]
  %s1 = inlined_call_operand.vmem [shape: f32[25,64], index: 1, kind: input, shape index: {}]
  %s2 = inlined_call_operand.vmem [shape: bf16[2,4,64], index: 2, kind: output, shape index: {0}]
  %s3 = inlined_call_operand.vmem [shape: f32[2,2,64], index: 3, kind: output, shape index: {1}]
  %4 = xla_tuple %s2, %s3
  %s5 = sld [smem:[#allocation0]]
  $region49: #{forward.12} parent=0
    _
  %s7 = ssub.s32 1, %s5
  %s8 = scalar_select 0, %s7, %s5
  loop: start=0, step=1, limit=4
  $region2: #{forward.12} parent=0 // loop_pre_header
    _
  $region3: #{forward.12} parent=0 // loop_header
    %s10 = sphi 0, %s14
    %p11 = scmp.ge.s32.totalorder %s10, 4
    %s20 = sphi 0, %s22
    %s23 = sphi 0, %s20
    %s24 = sphi 0, %s23
    %s40 = sphi 0, %s24
    %s44 = sphi 0, %s44
    %s46 = sphi 0, %s44
    %s47 = sphi 0, %s46
    %s61 = sphi 0, %s47
    %s67 = sphi 0, %s69
    %s70 = sphi 0, %s67
    %s71 = sphi 0, %s70
    %s87 = sphi 0, %s71
    %s93 = sphi 0, %s95
    %s96 = sphi 0, %s93
    %s97 = sphi 0, %s96
    %s113 = sphi 0, %s97
  $region4: #{forward.12} parent=0 // loop_header_branch
    %13 = sbr.rel (%p11) target = $region8
  $region5: #{forward.12} parent=0 // loop_body
    %s15 = ssub.s32 %s10, 1
    %s16 = ssub.s32 %s10, 2
    %s17 = sadd.s32 %s10, 1
    %s18 = ssub.s32 %s10, %s17
    %p19 = scmp.eq.s32.totalorder %s18, 0
    %s21 = sadd.s32 %s20, 1
    %s22 = scalar_select %p19, %s20, %s21
    %p25 = pneg %p19
    %p26 = scmp.eq.s32.totalorder %s10, 1
    %p27 = por %p25, %p26
    %p28 = scmp.ne.s32.totalorder %s20, %s23
    %p29 = scmp.eq.s32.totalorder %s10, 0
    %p30 = por %p28, %p29
    %p31 = scmp.ne.s32.totalorder %s20, %s23
    %p32 = scmp.eq.s32.totalorder %s15, 1
    %p33 = por %p31, %p32
    %p34 = scmp.ne.s32.totalorder %s23, %s24
    %p35 = scmp.eq.s32.totalorder %s15, 0
    %p36 = por %p34, %p35
    %p37 = scmp.ne.s32.totalorder %s23, %s24
    %p38 = scmp.eq.s32.totalorder %s16, 1
    %p39 = por %p37, %p38
    %p41 = scmp.ne.s32.totalorder %s24, %s40
    %p42 = scmp.eq.s32.totalorder %s16, 0
    %p43 = por %p41, %p42
    %s45 = sadd.s32 %s44, 1
    %p48 = scmp.eq.s32.totalorder %s10, 1
    %p49 = scmp.ne.s32.totalorder %s44, %s46
    %p50 = scmp.eq.s32.totalorder %s10, 0
    %p51 = por %p49, %p50
    %p52 = scmp.ne.s32.totalorder %s44, %s46
    %p53 = scmp.eq.s32.totalorder %s15, 1
    %p54 = por %p52, %p53
    %p55 = scmp.ne.s32.totalorder %s46, %s47
    %p56 = scmp.eq.s32.totalorder %s15, 0
    %p57 = por %p55, %p56
    %p58 = scmp.ne.s32.totalorder %s46, %s47
    %p59 = scmp.eq.s32.totalorder %s16, 1
    %p60 = por %p58, %p59
    %p62 = scmp.ne.s32.totalorder %s47, %s61
    %p63 = scmp.eq.s32.totalorder %s16, 0
    %p64 = por %p62, %p63
    %s65 = ssub.s32 %s10, %s17
    %p66 = scmp.eq.s32.totalorder %s65, 0
    %s68 = sadd.s32 %s67, 1
    %s69 = scalar_select %p66, %s67, %s68
    %p72 = pneg %p66
    %p73 = scmp.eq.s32.totalorder %s10, 1
    %p74 = por %p72, %p73
    %p75 = scmp.ne.s32.totalorder %s67, %s70
    %p76 = scmp.eq.s32.totalorder %s10, 0
    %p77 = por %p75, %p76
    %p78 = scmp.ne.s32.totalorder %s67, %s70
    %p79 = scmp.eq.s32.totalorder %s15, 1
    %p80 = por %p78, %p79
    %p81 = scmp.ne.s32.totalorder %s70, %s71
    %p82 = scmp.eq.s32.totalorder %s15, 0
    %p83 = por %p81, %p82
    %p84 = scmp.ne.s32.totalorder %s70, %s71
    %p85 = scmp.eq.s32.totalorder %s16, 1
    %p86 = por %p84, %p85
    %p88 = scmp.ne.s32.totalorder %s71, %s87
    %p89 = scmp.eq.s32.totalorder %s16, 0
    %p90 = por %p88, %p89
    %s91 = ssub.s32 %s10, %s17
    %p92 = scmp.eq.s32.totalorder %s91, 0
    %s94 = sadd.s32 %s93, 1
    %s95 = scalar_select %p92, %s93, %s94
    %p98 = pneg %p92
    %p99 = scmp.eq.s32.totalorder %s10, 1
    %p100 = por %p98, %p99
    %p101 = scmp.ne.s32.totalorder %s93, %s96
    %p102 = scmp.eq.s32.totalorder %s10, 0
    %p103 = por %p101, %p102
    %p104 = scmp.ne.s32.totalorder %s93, %s96
    %p105 = scmp.eq.s32.totalorder %s15, 1
    %p106 = por %p104, %p105
    %p107 = scmp.ne.s32.totalorder %s96, %s97
    %p108 = scmp.eq.s32.totalorder %s15, 0
    %p109 = por %p107, %p108
    %p110 = scmp.ne.s32.totalorder %s96, %s97
    %p111 = scmp.eq.s32.totalorder %s16, 1
    %p112 = por %p110, %p111
    %p114 = scmp.ne.s32.totalorder %s97, %s113
    %p115 = scmp.eq.s32.totalorder %s16, 0
    %p116 = por %p114, %p115
    %p117 = scmp.le.s32.totalorder 1, %s10
    %p118 = scmp.lt.s32.totalorder %s10, 3
    %p119 = pnand %p117, %p118
    %p120 = pneg %p119
    // Predicated region
    $region9: #{forward.12} parent=5 // pred_check
      _
    $region10: #{forward.12} parent=5 // pred_check_branch
      %122 = sbr.rel (%p119) target = $region12
    $region11: #{forward.12} parent=5 // pred_region
      %s123 = ssub.s32 %s10, 1
      // Predicated region
      $region13: #{forward.12} parent=11 // pred_check
        %p124 = pneg %p57
      $region14: #{forward.12} parent=11 // pred_check_branch
        %126 = sbr.rel (%p124) target = $region16
      $region15: #{forward.12} parent=11 // pred_region
        _
      $region16: #{forward.12} parent=11 // pred_fallthru
        _
    $region12: #{forward.12} parent=5 // pred_fallthru
      _
    %p127 = scmp.lt.s32.totalorder %s10, 2
    // Predicated region
    $region17: #{forward.12} parent=5 // pred_check
      %p128 = pneg %p127
    $region18: #{forward.12} parent=5 // pred_check_branch
      %130 = sbr.rel (%p128) target = $region20
    $region19: #{forward.12} parent=5 // pred_region
      // Predicated region
      $region21: #{forward.12} parent=19 // pred_check
        %p131 = pneg %p30
      $region22: #{forward.12} parent=19 // pred_check_branch
        %133 = sbr.rel (%p131) target = $region24
      $region23: #{forward.12} parent=19 // pred_region
        %p134 = scmp.lt.s32.totalorder %s10, 1
        %s135 = scalar_select %p134, %s10, 1
        %s136 = smul.addr %s135, 4
        %s137 = smul.addr %s136, 4
        %s138 = scalar_lea.vmem %s0, %s137
      $region24: #{forward.12} parent=19 // pred_fallthru
        _
    $region20: #{forward.12} parent=5 // pred_fallthru
      _
    %p139 = scmp.le.s32.totalorder 1, %s10
    %p140 = scmp.lt.s32.totalorder %s10, 3
    %p141 = pnand %p139, %p140
    %p142 = pneg %p141
    // Predicated region
    $region25: #{forward.12} parent=5 // pred_check
      _
    $region26: #{forward.12} parent=5 // pred_check_branch
      %144 = sbr.rel (%p141) target = $region28
    $region27: #{forward.12} parent=5 // pred_region
      %s145 = ssub.s32 %s10, 1
      %p146 = scmp.lt.s32.totalorder %s15, 1
      %s147 = scalar_select %p146, %s15, 1
      %s148 = smul.addr %s147, 4
      %s149 = smul.addr %s148, 4
      %s150 = scalar_lea.vmem %s0, %s149
      %p151 = pneg %p36
      %p152 = pneg %p33
      %p153 = pneg %p57
      %p154 = pneg %p54
      %p155 = pneg %p83
      %p156 = pneg %p80
      %p157 = scmp.lt.s32.totalorder %s15, 1
      %s158 = scalar_select %p157, %s15, 1
      %s159 = smul.addr %s158, 2
      %s160 = scalar_lea.vmem %s2, %s159
      %p161 = pneg %p109
      %p162 = pneg %p106
      %p163 = scmp.lt.s32.totalorder %s15, 1
      %s164 = scalar_select %p163, %s15, 1
      %s165 = smul.addr %s164, 2
      %s166 = scalar_lea.vmem %s3, %s165
      %p167 = scmp.lt.s32.totalorder %s15, 1
      %s168 = scalar_select %p167, %s15, 1
      %s169 = smul.addr %s168, 4
      %s170 = smul.addr %s169, 4
      %s171 = scalar_lea.vmem %s0, %s170
      %p172 = scmp.lt.s32.totalorder %s15, 1
      %s173 = scalar_select %p172, %s15, 1
      %s174 = smul.addr %s173, 2
      %s175 = scalar_lea.vmem %s2, %s174
      %p176 = scmp.lt.s32.totalorder %s15, 1
      %s177 = scalar_select %p176, %s15, 1
      %s178 = smul.addr %s177, 2
      %s179 = scalar_lea.vmem %s3, %s178
      %v180 = vld [vmem:[%s171] sm:$0x7]
      %v181 = vunpack.c.l.bf16 %v180
      %s182 = scalar_lea.vmem %s171, 4
      %v183 = vld [vmem:[%s182] sm:$0x7]
      %v184 = vunpack.c.l.bf16 %v183
      %s185 = scalar_lea.vmem %s171, 8
      %v186 = vld [vmem:[%s185] sm:$0x7]
      %v187 = vunpack.c.l.bf16 %v186
      %s188 = scalar_lea.vmem %s171, 12
      %v189 = vld [vmem:[%s188] sm:$0x7]
      %v190 = vunpack.c.l.bf16 %v189
      %v191 = vld [vmem:[%s1] sm:$0x1]
      %v192 = vlaneseq
      %v193 = vshrl.u32 %v192, 7
      %v194 = vsub.s32 0, %v193
      %v195 = vrot.slane %v191, %v194
      %v196 = vmul.f32 %v181, %v195
      %v197 = vadd.f32 %v196, 0.0
      %v198 = vld [vmem:[%s1 + $0x1] sm:$0x1]
      %v199 = vlaneseq
      %v200 = vshrl.u32 %v199, 7
      %v201 = vsub.s32 0, %v200
      %v202 = vrot.slane %v198, %v201
      %v203 = vmul.f32 %v184, %v202
      %v204 = vadd.f32 %v197, %v203
      %v205 = vld [vmem:[%s1 + $0x2] sm:$0x1]
      %v206 = vlaneseq
      %v207 = vshrl.u32 %v206, 7
      %v208 = vsub.s32 0, %v207
      %v209 = vrot.slane %v205, %v208
      %211 = vrot.lane.b32.xlu0 %v209, 16
      %v212 = vpop.permute.xlu0 %211
      %v214 = vmul.f32 %v181, %v212
      %216 = vrot.lane.b32.xlu0 %v214, 112
      %v217 = vpop.permute.xlu0 %216
      %v219 = vadd.f32 %v204, %v217
      %v220 = vld [vmem:[%s1 + $0x3] sm:$0x1]
      %v221 = vlaneseq
      %v222 = vshrl.u32 %v221, 7
      %v223 = vsub.s32 0, %v222
      %v224 = vrot.slane %v220, %v223
      %226 = vrot.lane.b32.xlu0 %v224, 16
      %v227 = vpop.permute.xlu0 %226
      %v229 = vmul.f32 %v184, %v227
      %231 = vrot.lane.b32.xlu0 %v229, 112
      %v232 = vpop.permute.xlu0 %231
      %v234 = vadd.f32 %v219, %v232
      %v235 = vld [vmem:[%s1 + $0x4] sm:$0x1]
      %v236 = vlaneseq
      %v237 = vshrl.u32 %v236, 7
      %v238 = vsub.s32 0, %v237
      %v239 = vrot.slane %v235, %v238
      %241 = vrot.lane.b32.xlu0 %v239, 32
      %v242 = vpop.permute.xlu0 %241
      %v244 = vmul.f32 %v181, %v242
      %246 = vrot.lane.b32.xlu0 %v244, 96
      %v247 = vpop.permute.xlu0 %246
      %v249 = vadd.f32 %v234, %v247
      %v250 = vld [vmem:[%s1 + $0x5] sm:$0x1]
      %v251 = vlaneseq
      %v252 = vshrl.u32 %v251, 7
      %v253 = vsub.s32 0, %v252
      %v254 = vrot.slane %v250, %v253
      %v255 = vmul.f32 %v187, %v254
      %v256 = vadd.f32 %v249, %v255
      %v257 = vld [vmem:[%s1 + $0x6] sm:$0x1]
      %v258 = vlaneseq
      %v259 = vshrl.u32 %v258, 7
      %v260 = vsub.s32 0, %v259
      %v261 = vrot.slane %v257, %v260
      %v262 = vmul.f32 %v190, %v261
      %v263 = vadd.f32 %v256, %v262
      %v264 = vld [vmem:[%s1 + $0x7] sm:$0x1]
      %v265 = vlaneseq
      %v266 = vshrl.u32 %v265, 7
      %v267 = vsub.s32 0, %v266
      %v268 = vrot.slane %v264, %v267
      %270 = vrot.lane.b32.xlu0 %v268, 16
      %v271 = vpop.permute.xlu0 %270
      %v273 = vmul.f32 %v187, %v271
      %275 = vrot.lane.b32.xlu0 %v273, 112
      %v276 = vpop.permute.xlu0 %275
      %v278 = vadd.f32 %v263, %v276
      %v279 = vld [vmem:[%s1 + $0x8] sm:$0x1]
      %v280 = vlaneseq
      %v281 = vshrl.u32 %v280, 7
      %v282 = vsub.s32 0, %v281
      %v283 = vrot.slane %v279, %v282
      %285 = vrot.lane.b32.xlu0 %v283, 16
      %v286 = vpop.permute.xlu0 %285
      %v288 = vmul.f32 %v190, %v286
      %290 = vrot.lane.b32.xlu0 %v288, 112
      %v291 = vpop.permute.xlu0 %290
      %v293 = vadd.f32 %v278, %v291
      %v294 = vld [vmem:[%s1 + $0x9] sm:$0x1]
      %v295 = vlaneseq
      %v296 = vshrl.u32 %v295, 7
      %v297 = vsub.s32 0, %v296
      %v298 = vrot.slane %v294, %v297
      %300 = vrot.lane.b32.xlu0 %v298, 32
      %v301 = vpop.permute.xlu0 %300
      %v303 = vmul.f32 %v187, %v301
      %305 = vrot.lane.b32.xlu0 %v303, 96
      %v306 = vpop.permute.xlu0 %305
      %v308 = vadd.f32 %v293, %v306
      %v309 = vld [vmem:[%s1 + $0xa] sm:$0x1]
      %v310 = vlaneseq
      %v311 = vshrl.u32 %v310, 7
      %v312 = vsub.s32 0, %v311
      %v313 = vrot.slane %v309, %v312
      %v314 = vmul.f32 %v181, %v313
      %v316 = vrot.slane %v314, 1
      %v318 = vadd.f32 %v308, %v316
      %v319 = vld [vmem:[%s1 + $0xb] sm:$0x1]
      %v320 = vlaneseq
      %v321 = vshrl.u32 %v320, 7
      %v322 = vsub.s32 0, %v321
      %v323 = vrot.slane %v319, %v322
      %v324 = vmul.f32 %v184, %v323
      %v326 = vrot.slane %v324, 1
      %v328 = vadd.f32 %v318, %v326
      %v329 = vld [vmem:[%s1 + $0xc] sm:$0x1]
      %v330 = vlaneseq
      %v331 = vshrl.u32 %v330, 7
      %v332 = vsub.s32 0, %v331
      %v333 = vrot.slane %v329, %v332
      %335 = vrot.lane.b32.xlu0 %v333, 16
      %v336 = vpop.permute.xlu0 %335
      %v338 = vmul.f32 %v181, %v336
      %v340 = vrot.slane %v338, 1
      %341 = vrot.lane.b32.xlu0 %v340, 112
      %v342 = vpop.permute.xlu0 %341
      %v344 = vadd.f32 %v328, %v342
      %v345 = vld [vmem:[%s1 + $0xd] sm:$0x1]
      %v346 = vlaneseq
      %v347 = vshrl.u32 %v346, 7
      %v348 = vsub.s32 0, %v347
      %v349 = vrot.slane %v345, %v348
      %351 = vrot.lane.b32.xlu0 %v349, 16
      %v352 = vpop.permute.xlu0 %351
      %v354 = vmul.f32 %v184, %v352
      %v356 = vrot.slane %v354, 1
      %357 = vrot.lane.b32.xlu0 %v356, 112
      %v358 = vpop.permute.xlu0 %357
      %v360 = vadd.f32 %v344, %v358
      %v361 = vld [vmem:[%s1 + $0xe] sm:$0x1]
      %v362 = vlaneseq
      %v363 = vshrl.u32 %v362, 7
      %v364 = vsub.s32 0, %v363
      %v365 = vrot.slane %v361, %v364
      %367 = vrot.lane.b32.xlu0 %v365, 32
      %v368 = vpop.permute.xlu0 %367
      %v370 = vmul.f32 %v181, %v368
      %v372 = vrot.slane %v370, 1
      %373 = vrot.lane.b32.xlu0 %v372, 96
      %v374 = vpop.permute.xlu0 %373
      %v376 = vadd.f32 %v360, %v374
      %v377 = vld [vmem:[%s1 + $0xf] sm:$0x1]
      %v378 = vlaneseq
      %v379 = vshrl.u32 %v378, 7
      %v380 = vsub.s32 0, %v379
      %v381 = vrot.slane %v377, %v380
      %v382 = vmul.f32 %v187, %v381
      %v384 = vrot.slane %v382, 1
      %v386 = vadd.f32 %v376, %v384
      %v387 = vld [vmem:[%s1 + $0x10] sm:$0x1]
      %v388 = vlaneseq
      %v389 = vshrl.u32 %v388, 7
      %v390 = vsub.s32 0, %v389
      %v391 = vrot.slane %v387, %v390
      %v392 = vmul.f32 %v190, %v391
      %v394 = vrot.slane %v392, 1
      %v396 = vadd.f32 %v386, %v394
      %v397 = vld [vmem:[%s1 + $0x11] sm:$0x1]
      %v398 = vlaneseq
      %v399 = vshrl.u32 %v398, 7
      %v400 = vsub.s32 0, %v399
      %v401 = vrot.slane %v397, %v400
      %403 = vrot.lane.b32.xlu0 %v401, 16
      %v404 = vpop.permute.xlu0 %403
      %v406 = vmul.f32 %v187, %v404
      %v408 = vrot.slane %v406, 1
      %409 = vrot.lane.b32.xlu0 %v408, 112
      %v410 = vpop.permute.xlu0 %409
      %v412 = vadd.f32 %v396, %v410
      %v413 = vld [vmem:[%s1 + $0x12] sm:$0x1]
      %v414 = vlaneseq
      %v415 = vshrl.u32 %v414, 7
      %v416 = vsub.s32 0, %v415
      %v417 = vrot.slane %v413, %v416
      %419 = vrot.lane.b32.xlu0 %v417, 16
      %v420 = vpop.permute.xlu0 %419
      %v422 = vmul.f32 %v190, %v420
      %v424 = vrot.slane %v422, 1
      %425 = vrot.lane.b32.xlu0 %v424, 112
      %v426 = vpop.permute.xlu0 %425
      %v428 = vadd.f32 %v412, %v426
      %v429 = vld [vmem:[%s1 + $0x13] sm:$0x1]
      %v430 = vlaneseq
      %v431 = vshrl.u32 %v430, 7
      %v432 = vsub.s32 0, %v431
      %v433 = vrot.slane %v429, %v432
      %435 = vrot.lane.b32.xlu0 %v433, 32
      %v436 = vpop.permute.xlu0 %435
      %v438 = vmul.f32 %v187, %v436
      %v440 = vrot.slane %v438, 1
      %441 = vrot.lane.b32.xlu0 %v440, 96
      %v442 = vpop.permute.xlu0 %441
      %v444 = vadd.f32 %v428, %v442
      %v445 = vld [vmem:[%s1 + $0x14] sm:$0x1]
      %v446 = vlaneseq
      %v447 = vshrl.u32 %v446, 7
      %v448 = vsub.s32 0, %v447
      %v449 = vrot.slane %v445, %v448
      %v450 = vmul.f32 %v181, %v449
      %v452 = vrot.slane %v450, 2
      %v454 = vadd.f32 %v444, %v452
      %v455 = vld [vmem:[%s1 + $0x15] sm:$0x1]
      %v456 = vlaneseq
      %v457 = vshrl.u32 %v456, 7
      %v458 = vsub.s32 0, %v457
      %v459 = vrot.slane %v455, %v458
      %v460 = vmul.f32 %v184, %v459
      %v462 = vrot.slane %v460, 2
      %v464 = vadd.f32 %v454, %v462
      %v465 = vld [vmem:[%s1 + $0x16] sm:$0x1]
      %v466 = vlaneseq
      %v467 = vshrl.u32 %v466, 7
      %v468 = vsub.s32 0, %v467
      %v469 = vrot.slane %v465, %v468
      %471 = vrot.lane.b32.xlu0 %v469, 16
      %v472 = vpop.permute.xlu0 %471
      %v474 = vmul.f32 %v181, %v472
      %v476 = vrot.slane %v474, 2
      %477 = vrot.lane.b32.xlu0 %v476, 112
      %v478 = vpop.permute.xlu0 %477
      %v480 = vadd.f32 %v464, %v478
      %v481 = vld [vmem:[%s1 + $0x17] sm:$0x1]
      %v482 = vlaneseq
      %v483 = vshrl.u32 %v482, 7
      %v484 = vsub.s32 0, %v483
      %v485 = vrot.slane %v481, %v484
      %487 = vrot.lane.b32.xlu0 %v485, 16
      %v488 = vpop.permute.xlu0 %487
      %v490 = vmul.f32 %v184, %v488
      %v492 = vrot.slane %v490, 2
      %493 = vrot.lane.b32.xlu0 %v492, 112
      %v494 = vpop.permute.xlu0 %493
      %v496 = vadd.f32 %v480, %v494
      %v497 = vld [vmem:[%s1 + $0x18] sm:$0x1]
      %v498 = vlaneseq
      %v499 = vshrl.u32 %v498, 7
      %v500 = vsub.s32 0, %v499
      %v501 = vrot.slane %v497, %v500
      %503 = vrot.lane.b32.xlu0 %v501, 32
      %v504 = vpop.permute.xlu0 %503
      %v506 = vmul.f32 %v181, %v504
      %v508 = vrot.slane %v506, 2
      %509 = vrot.lane.b32.xlu0 %v508, 96
      %v510 = vpop.permute.xlu0 %509
      %v512 = vadd.f32 %v496, %v510
      %v513 = vpack.c.bf16 %v512, %v512
      %vm514 = vcmask 517120
      %515 = vst.msk [vmem:[%s175] sm:$0x3] %vm514, %v513
      %vm516 = vcmask 519168
      %v517 = vsel %vm516, %v512, 0.0
      %v518 = vrot.slane %v517, 4
      %v519 = vadd.f32 %v517, %v518
      %v520 = vrot.slane %v519, 2
      %v521 = vadd.f32 %v519, %v520
      %v522 = vrot.slane %v521, 1
      %v523 = vadd.f32 %v521, %v522
      %vm524 = vcmask 516096
      %525 = vst.msk [vmem:[%s179] sm:$0x1] %vm524, %v523
      %v526 = vmul.f32 %v512, %v512
      %v527 = vsel %vm516, %v526, 0.0
      %v528 = vrot.slane %v527, 4
      %v529 = vadd.f32 %v527, %v528
      %v530 = vrot.slane %v529, 2
      %v531 = vadd.f32 %v529, %v530
      %v532 = vrot.slane %v531, 1
      %v533 = vadd.f32 %v531, %v532
      %534 = vst.msk [vmem:[%s179 + $0x1] sm:$0x1] %vm524, %v533
      %p535 = scmp.lt.s32.totalorder %s15, 1
      %s536 = scalar_select %p535, %s15, 1
      %s537 = smul.addr %s536, 2
      %s538 = scalar_lea.vmem %s2, %s537
      %p539 = scmp.lt.s32.totalorder %s15, 1
      %s540 = scalar_select %p539, %s15, 1
      %s541 = smul.addr %s540, 2
      %s542 = scalar_lea.vmem %s3, %s541
      // Predicated region
      $region29: #{forward.12} parent=27 // pred_check
        %p543 = pneg %p80
      $region30: #{forward.12} parent=27 // pred_check_branch
        %545 = sbr.rel (%p543) target = $region32
      $region31: #{forward.12} parent=27 // pred_region
        _
      $region32: #{forward.12} parent=27 // pred_fallthru
        _
      // Predicated region
      $region33: #{forward.12} parent=27 // pred_check
        %p546 = pneg %p106
      $region34: #{forward.12} parent=27 // pred_check_branch
        %548 = sbr.rel (%p546) target = $region36
      $region35: #{forward.12} parent=27 // pred_region
        _
      $region36: #{forward.12} parent=27 // pred_fallthru
        _
    $region28: #{forward.12} parent=5 // pred_fallthru
      _
    %p549 = scmp.le.s32.totalorder 2, %s10
    // Predicated region
    $region37: #{forward.12} parent=5 // pred_check
      %p550 = pneg %p549
    $region38: #{forward.12} parent=5 // pred_check_branch
      %552 = sbr.rel (%p550) target = $region40
    $region39: #{forward.12} parent=5 // pred_region
      %s553 = ssub.s32 %s10, 2
      // Predicated region
      $region41: #{forward.12} parent=39 // pred_check
        %p554 = pneg %p86
      $region42: #{forward.12} parent=39 // pred_check_branch
        %556 = sbr.rel (%p554) target = $region44
      $region43: #{forward.12} parent=39 // pred_region
        %p557 = scmp.lt.s32.totalorder %s16, 1
        %s558 = scalar_select %p557, %s16, 1
        %s559 = smul.addr %s558, 2
        %s560 = scalar_lea.vmem %s2, %s559
      $region44: #{forward.12} parent=39 // pred_fallthru
        _
      // Predicated region
      $region45: #{forward.12} parent=39 // pred_check
        %p561 = pneg %p112
      $region46: #{forward.12} parent=39 // pred_check_branch
        %563 = sbr.rel (%p561) target = $region48
      $region47: #{forward.12} parent=39 // pred_region
        %p564 = scmp.lt.s32.totalorder %s16, 1
        %s565 = scalar_select %p564, %s16, 1
        %s566 = smul.addr %s565, 2
        %s567 = scalar_lea.vmem %s3, %s566
      $region48: #{forward.12} parent=39 // pred_fallthru
        _
    $region40: #{forward.12} parent=5 // pred_fallthru
      _
  $region6: #{forward.12} parent=0 // loop_footer
    %s14 = sadd.s32 1, %s10
  $region7: #{forward.12} parent=0 // loop_footer_branch
    %9 = sbr.rel target = $region3
  $region8: #{forward.12} parent=0 // loop_exit
    _

// kernel: forward.13
$region0: #{forward.13}
  #allocation0 [shape = 'u32[]', space=smem, size = 0x4, offset = 0x4, fixed_abs, tag = 'smem constant byte address 0x4 - core index']
  #allocation1 [shape = 'u32[144,128]{1,0:T(1,128)}', space=vmem, size = 0x12000, scoped, tag = 'internal scratch']
  %s0 = inlined_call_operand.vmem [shape: bf16[16,64], index: 0, kind: input, shape index: {}]
  %s1 = inlined_call_operand.vmem [shape: f32[1,64], index: 1, kind: input, shape index: {}]
  %s2 = inlined_call_operand.vmem [shape: f32[1,64], index: 2, kind: input, shape index: {}]
  %s3 = inlined_call_operand.vmem [shape: f32[16,64], index: 3, kind: output, shape index: {}]
  %s4 = sld [smem:[#allocation0]]
  $region22: #{forward.13} parent=0
    _
  %s6 = ssub.s32 1, %s4
  %s7 = scalar_select 0, %s6, %s4
  // Predicated region
  $region2: #{forward.13} parent=0 // pred_check
    _
  $region3: #{forward.13} parent=0 // pred_check_branch
    %9 = sbr.rel (0) target = $region5
  $region4: #{forward.13} parent=0 // pred_region
    _
  $region5: #{forward.13} parent=0 // pred_fallthru
    _
  // Predicated region
  $region6: #{forward.13} parent=0 // pred_check
    _
  $region7: #{forward.13} parent=0 // pred_check_branch
    %11 = sbr.rel (0) target = $region9
  $region8: #{forward.13} parent=0 // pred_region
    _
  $region9: #{forward.13} parent=0 // pred_fallthru
    _
  // Predicated region
  $region10: #{forward.13} parent=0 // pred_check
    _
  $region11: #{forward.13} parent=0 // pred_check_branch
    %13 = sbr.rel (0) target = $region13
  $region12: #{forward.13} parent=0 // pred_region
    _
  $region13: #{forward.13} parent=0 // pred_fallthru
    _
  %v14 = vld [vmem:[%s0] sm:$0xf]
  %v15 = vld [vmem:[%s0 + $0x4] sm:$0xf]
  %v16 = vunpack.c.l.bf16 %v14
  %v17 = vunpack.c.l.bf16 %v15
  %v18 = vld [vmem:[%s1] sm:$0x1]
  %v20 = vlaneseq
  %v21 = vshrl.u32 %v20, 7
  %v22 = vsub.s32 0, %v21
  %v23 = vrot.slane %v18, %v22
  %v25 = vmul.f32 %v16, %v23
  %v26 = vmul.f32 %v17, %v23
  %v27 = vld [vmem:[%s2] sm:$0x1]
  %v29 = vlaneseq
  %v30 = vshrl.u32 %v29, 7
  %v31 = vsub.s32 0, %v30
  %v32 = vrot.slane %v27, %v31
  %v34 = vadd.f32 %v25, %v32
  %v35 = vadd.f32 %v26, %v32
  %v36 = vmax.f32 %v34, 0.0
  %v37 = vmax.f32 %v35, 0.0
  %v38 = vmin.f32 %v36, 6.0
  %v39 = vmin.f32 %v37, 6.0
  %vm40 = vcmask 523264
  %41 = vst.msk [vmem:[%s3] sm:$0xff] %vm40, %v38
  %42 = vst.msk [vmem:[%s3 + $0x8] sm:$0xff] %vm40, %v39
  // Predicated region
  $region14: #{forward.13} parent=0 // pred_check
    _
  $region15: #{forward.13} parent=0 // pred_check_branch
    %44 = sbr.rel (0) target = $region17
  $region16: #{forward.13} parent=0 // pred_region
    _
  $region17: #{forward.13} parent=0 // pred_fallthru
    _
  // Predicated region
  $region18: #{forward.13} parent=0 // pred_check
    _
  $region19: #{forward.13} parent=0 // pred_check_branch
    %46 = sbr.rel (0) target = $region21
  $region20: #{forward.13} parent=0 // pred_region
    _
  $region21: #{forward.13} parent=0 // pred_fallthru
    _

// kernel: forward.14
$region0: #{forward.14}
  #allocation0 [shape = 'u32[]', space=smem, size = 0x4, offset = 0x4, fixed_abs, tag = 'smem constant byte address 0x4 - core index']
  #allocation1 [shape = 'u32[144,128]{1,0:T(1,128)}', space=vmem, size = 0x12000, scoped, tag = 'internal scratch']
  %s0 = inlined_call_operand.vmem [shape: bf16[16,64], index: 0, kind: input, shape index: {}]
  %s1 = inlined_call_operand.vmem [shape: bf16[64,128], index: 1, kind: input, shape index: {}]
  %s2 = inlined_call_operand.vmem [shape: bf16[16,128], index: 2, kind: output, shape index: {0}]
  %s3 = inlined_call_operand.vmem [shape: f32[1,2,128], index: 3, kind: output, shape index: {1}]
  %4 = xla_tuple %s2, %s3
  %s5 = sld [smem:[#allocation0]]
  $region26: #{forward.14} parent=0
    _
  %s7 = ssub.s32 1, %s5
  %s8 = scalar_select 0, %s7, %s5
  // Predicated region
  $region2: #{forward.14} parent=0 // pred_check
    _
  $region3: #{forward.14} parent=0 // pred_check_branch
    %10 = sbr.rel (0) target = $region5
  $region4: #{forward.14} parent=0 // pred_region
    _
  $region5: #{forward.14} parent=0 // pred_fallthru
    _
  // Predicated region
  $region6: #{forward.14} parent=0 // pred_check
    _
  $region7: #{forward.14} parent=0 // pred_check_branch
    %12 = sbr.rel (0) target = $region9
  $region8: #{forward.14} parent=0 // pred_region
    _
  $region9: #{forward.14} parent=0 // pred_fallthru
    _
  %v14 = vld [vmem:[%s0] sm:$0xf]
  %v15 = vld [vmem:[%s0 + $0x4] sm:$0xf]
  %v16 = vld [vmem:[%s1] sm:$0xf]
  %v17 = vld [vmem:[%s1 + $0x4] sm:$0xf]
  %v18 = vld [vmem:[%s1 + $0x8] sm:$0xf]
  %v19 = vld [vmem:[%s1 + $0xc] sm:$0xf]
  %v20 = vld [vmem:[%s1 + $0x10] sm:$0xf]
  %v21 = vld [vmem:[%s1 + $0x14] sm:$0xf]
  %v22 = vld [vmem:[%s1 + $0x18] sm:$0xf]
  %v23 = vld [vmem:[%s1 + $0x1c] sm:$0xf]
  %v26 = vunpack.c.l.b16 %v14
  %v27 = vunpack.c.l.b16 %v15
  %v28 = vpack.c.b16 %v27, %v26
  %v37 = vunpack.c.l.b16 %v16
  %v38 = vunpack.c.l.b16 %v17
  %v39 = vunpack.c.l.b16 %v18
  %v40 = vunpack.c.l.b16 %v19
  %v41 = vunpack.c.l.b16 %v20
  %v42 = vunpack.c.l.b16 %v21
  %v43 = vunpack.c.l.b16 %v22
  %v44 = vunpack.c.l.b16 %v23
  %v45 = vpack.c.b16 %v38, %v37
  %v46 = vpack.c.b16 %v40, %v39
  %v47 = vpack.c.b16 %v42, %v41
  %v48 = vpack.c.b16 %v44, %v43
  %vm53 = vcmask 523264
  %v55 = vsel %vm53, %v28, 0
  %57 = vmatprep.subr.bf16.mxu0 0
  %58 = vmatpush1.bf16.msra.mxu0 %v45
  %59 = vmatprep.subr.bf16.mxu0 0
  %60 = vmatpush1.bf16.msra.mxu0 %v46
  %61 = vmatprep.subr.bf16.mxu0 0
  %62 = vmatpush1.bf16.msra.mxu0 %v47
  %63 = vmatprep.subr.bf16.mxu0 0
  %64 = vmatpush1.bf16.msra.mxu0 %v48
  %65 = vmatprep.subr.bf16.mxu0 0
  %66 = vmatpush1.bf16.msra.mxu0 0
  %67 = vmatprep.subr.bf16.mxu0 0
  %68 = vmatpush1.bf16.msra.mxu0 0
  %69 = vmatprep.subr.bf16.mxu0 0
  %70 = vmatpush1.bf16.msra.mxu0 0
  %71 = vmatprep.subr.bf16.mxu0 0
  %72 = vmatpush1.bf16.msra.mxu0 0
  %73 = vmatprep.subr.bf16.mxu0 0
  %74 = vmatpush1.bf16.msra.mxu0 0
  %75 = vmatprep.subr.bf16.mxu0 0
  %76 = vmatpush1.bf16.msra.mxu0 0
  %77 = vmatprep.subr.bf16.mxu0 0
  %78 = vmatpush1.bf16.msra.mxu0 0
  %79 = vmatprep.subr.bf16.mxu0 0
  %80 = vmatpush1.bf16.msra.mxu0 0
  %81 = vmatprep.subr.bf16.mxu0 0
  %82 = vmatpush1.bf16.msra.mxu0 0
  %83 = vmatprep.subr.bf16.mxu0 0
  %84 = vmatpush1.bf16.msra.mxu0 0
  %85 = vmatprep.subr.bf16.mxu0 0
  %86 = vmatpush1.bf16.msra.mxu0 0
  %87 = vmatprep.subr.bf16.mxu0 0
  %88 = vmatpush1.bf16.msra.mxu0 0
  %89 = vmatprep.mubr.bf16.mxu0 0
  %90 = vmatmul.mubr.bf16.gmra.mrb[0].mxu0 %v55
  %v91 = vpop.f32.mrb[0].mxu0
  %v92 = vadd.f32 0.0, %v91
  %v93 = vpop.f32.mrb[0].mxu0
  %v94 = vpop.f32.mrb[0].mxu0
  %v95 = vadd.f32 0.0, %v94
  %v96 = vpop.f32.mrb[0].mxu0
  %97 = vdwg.mxu0
  %v98 = vpack.c.bf16 %v95, %v92
  %v100 = vunpack.c.l.b16 %v98
  %v101 = vunpack.c.h.b16 %v98
  %v102 = vpack.c.b16 %v100, %v100
  %v103 = vpack.c.b16 %v101, %v101
  %106 = vst [vmem:[%s2] sm:$0xf] %v102
  %107 = vst [vmem:[%s2 + $0x4] sm:$0xf] %v103
  %v108 = vadd.f32 %v92, %v95
  %v109 = vrot.slane %v108, 4
  %v110 = vadd.f32 %v108, %v109
  %v111 = vrot.slane %v110, 2
  %v112 = vadd.f32 %v110, %v111
  %v113 = vrot.slane %v112, 1
  %v114 = vadd.f32 %v112, %v113
  %115 = vst [vmem:[%s3] sm:$0x1] %v114
  %v116 = vmul.f32 %v92, %v92
  %v117 = vmul.f32 %v95, %v95
  %v118 = vadd.f32 %v116, %v117
  %v119 = vrot.slane %v118, 4
  %v120 = vadd.f32 %v118, %v119
  %v121 = vrot.slane %v120, 2
  %v122 = vadd.f32 %v120, %v121
  %v123 = vrot.slane %v122, 1
  %v124 = vadd.f32 %v122, %v123
  %125 = vst [vmem:[%s3 + $0x1] sm:$0x1] %v124
  // Predicated region
  $region10: #{forward.14} parent=0 // pred_check
    _
  $region11: #{forward.14} parent=0 // pred_check_branch
    %127 = sbr.rel (0) target = $region13
  $region12: #{forward.14} parent=0 // pred_region
    _
  $region13: #{forward.14} parent=0 // pred_fallthru
    _
  // Predicated region
  $region14: #{forward.14} parent=0 // pred_check
    _
  $region15: #{forward.14} parent=0 // pred_check_branch
    %129 = sbr.rel (0) target = $region17
  $region16: #{forward.14} parent=0 // pred_region
    _
  $region17: #{forward.14} parent=0 // pred_fallthru
    _
  // Predicated region
  $region18: #{forward.14} parent=0 // pred_check
    _
  $region19: #{forward.14} parent=0 // pred_check_branch
    %131 = sbr.rel (0) target = $region21
  $region20: #{forward.14} parent=0 // pred_region
    _
  $region21: #{forward.14} parent=0 // pred_fallthru
    _
  // Predicated region
  $region22: #{forward.14} parent=0 // pred_check
    _
  $region23: #{forward.14} parent=0 // pred_check_branch
    %133 = sbr.rel (0) target = $region25
  $region24: #{forward.14} parent=0 // pred_region
    _
  $region25: #{forward.14} parent=0 // pred_fallthru
    _

// kernel: forward.15
$region0: #{forward.15}
  #allocation0 [shape = 'u32[]', space=smem, size = 0x4, offset = 0x4, fixed_abs, tag = 'smem constant byte address 0x4 - core index']
  #allocation1 [shape = 'u32[144,128]{1,0:T(1,128)}', space=vmem, size = 0x12000, scoped, tag = 'internal scratch']
  %s0 = inlined_call_operand.vmem [shape: bf16[16,128], index: 0, kind: input, shape index: {}]
  %s1 = inlined_call_operand.vmem [shape: f32[1,128], index: 1, kind: input, shape index: {}]
  %s2 = inlined_call_operand.vmem [shape: f32[1,128], index: 2, kind: input, shape index: {}]
  %s3 = inlined_call_operand.vmem [shape: f32[16,128], index: 3, kind: output, shape index: {}]
  %s4 = sld [smem:[#allocation0]]
  $region22: #{forward.15} parent=0
    _
  %s6 = ssub.s32 1, %s4
  %s7 = scalar_select 0, %s6, %s4
  // Predicated region
  $region2: #{forward.15} parent=0 // pred_check
    _
  $region3: #{forward.15} parent=0 // pred_check_branch
    %9 = sbr.rel (0) target = $region5
  $region4: #{forward.15} parent=0 // pred_region
    _
  $region5: #{forward.15} parent=0 // pred_fallthru
    _
  // Predicated region
  $region6: #{forward.15} parent=0 // pred_check
    _
  $region7: #{forward.15} parent=0 // pred_check_branch
    %11 = sbr.rel (0) target = $region9
  $region8: #{forward.15} parent=0 // pred_region
    _
  $region9: #{forward.15} parent=0 // pred_fallthru
    _
  // Predicated region
  $region10: #{forward.15} parent=0 // pred_check
    _
  $region11: #{forward.15} parent=0 // pred_check_branch
    %13 = sbr.rel (0) target = $region13
  $region12: #{forward.15} parent=0 // pred_region
    _
  $region13: #{forward.15} parent=0 // pred_fallthru
    _
  %v14 = vld [vmem:[%s0] sm:$0xf]
  %v15 = vld [vmem:[%s0 + $0x4] sm:$0xf]
  %v16 = vunpack.c.l.bf16 %v14
  %v17 = vunpack.c.l.bf16 %v15
  %v18 = vld [vmem:[%s1] sm:$0x1]
  %v20 = vlaneseq
  %v21 = vshrl.u32 %v20, 7
  %v22 = vsub.s32 0, %v21
  %v23 = vrot.slane %v18, %v22
  %v25 = vmul.f32 %v16, %v23
  %v26 = vmul.f32 %v17, %v23
  %v27 = vld [vmem:[%s2] sm:$0x1]
  %v29 = vlaneseq
  %v30 = vshrl.u32 %v29, 7
  %v31 = vsub.s32 0, %v30
  %v32 = vrot.slane %v27, %v31
  %v34 = vadd.f32 %v25, %v32
  %v35 = vadd.f32 %v26, %v32
  %36 = vst [vmem:[%s3] sm:$0xff] %v34
  %37 = vst [vmem:[%s3 + $0x8] sm:$0xff] %v35
  // Predicated region
  $region14: #{forward.15} parent=0 // pred_check
    _
  $region15: #{forward.15} parent=0 // pred_check_branch
    %39 = sbr.rel (0) target = $region17
  $region16: #{forward.15} parent=0 // pred_region
    _
  $region17: #{forward.15} parent=0 // pred_fallthru
    _
  // Predicated region
  $region18: #{forward.15} parent=0 // pred_check
    _
  $region19: #{forward.15} parent=0 // pred_check_branch
    %41 = sbr.rel (0) target = $region21
  $region20: #{forward.15} parent=0 // pred_region
    _
  $region21: #{forward.15} parent=0 // pred_fallthru
    _

</llo_original>
